<compile_context>
chip_gen: v5e
topology: v5e:2x2
jax: 0.10.0
libtpu: 0.0.40
codegen_flags: <defaults>
</compile_context>

<pallas_src>
import functools

import jax
import jax.numpy as jnp
from jax.experimental import pallas as pl
from jax.experimental.pallas import tpu as pltpu

LN_EPS = 1e-5
HEAD_PAD = 128  # lane-dense width for the classification-head output


# ----------------------------- Pallas kernel -------------------------------


def _model_kernel(num_layers, num_heads,
                  x_ref, m_ref,
                  eg_ref, eb_ref,
                  wqkv_ref, bqkv_ref, wo_ref, bo_ref,
                  ln1g_ref, ln1b_ref,
                  wi_ref, bi_ref, wf_ref, bf_ref,
                  ln2g_ref, ln2b_ref,
                  cw1_ref, cb1_ref, cw2_ref, cb2_ref,
                  o_ref):
    """Embedding-LN + all encoder layers + classification head for one batch row."""
    S, H = x_ref.shape[1], x_ref.shape[2]
    Dh = H // num_heads
    scale = 1.0 / float(Dh) ** 0.5

    def layer_norm(h, gamma, beta):
        mu = jnp.mean(h, axis=-1, keepdims=True)
        var = jnp.mean((h - mu) * (h - mu), axis=-1, keepdims=True)
        y = (h - mu) * jax.lax.rsqrt(var + LN_EPS)
        return y * gamma.astype(jnp.float32) + beta.astype(jnp.float32)

    # ---- embedding LayerNorm (dropout = eval no-op) ----
    xf = layer_norm(x_ref[0].astype(jnp.float32), eg_ref[...], eb_ref[...])   # (S, H) f32
    x16 = xf.astype(jnp.bfloat16)

    # additive attention-mask bias, built once and reused across layers/heads
    bias = (1.0 - m_ref[0].astype(jnp.float32)) * jnp.float32(-1e9)           # (1, S)

    for l in range(num_layers):                      # static -> unrolled
        # ---- multi-head self-attention (per-head weight blocks; bf16 MXU, f32 acc) ----
        attn = None
        for hd in range(num_heads):                  # static -> unrolled
            qh = jnp.dot(x16, wqkv_ref[l, 0, hd], preferred_element_type=jnp.float32) \
                + bqkv_ref[l, 0, hd].astype(jnp.float32)
            kh = jnp.dot(x16, wqkv_ref[l, 1, hd], preferred_element_type=jnp.float32) \
                + bqkv_ref[l, 1, hd].astype(jnp.float32)
            vh = jnp.dot(x16, wqkv_ref[l, 2, hd], preferred_element_type=jnp.float32) \
                + bqkv_ref[l, 2, hd].astype(jnp.float32)

            q16 = (qh * scale).astype(jnp.bfloat16)  # fold softmax scale into q
            k16 = kh.astype(jnp.bfloat16)
            v16 = vh.astype(jnp.bfloat16)

            # scores = q @ k^T via dot_general (MXU handles the transposed operand)
            s = jax.lax.dot_general(q16, k16, (((1,), (1,)), ((), ())),
                                    preferred_element_type=jnp.float32) + bias   # (S, S)
            s = s - jnp.max(s, axis=-1, keepdims=True)
            p = jnp.exp(s)
            p = p * pl.reciprocal(jnp.sum(p, axis=-1, keepdims=True), approx=True)

            ctx = jnp.dot(p.astype(jnp.bfloat16), v16,
                          preferred_element_type=jnp.float32)                    # (S, Dh)
            # out-projection: concat over heads == sum of per-head-block matmuls
            contrib = jnp.dot(ctx.astype(jnp.bfloat16), wo_ref[l, hd],
                              preferred_element_type=jnp.float32)                # (S, H)
            attn = contrib if attn is None else attn + contrib

        attn = attn + bo_ref[l].astype(jnp.float32)

        # ---- fused residual add + LayerNorm 1 ----
        y = layer_norm(attn + xf, ln1g_ref[l], ln1b_ref[l])
        y16 = y.astype(jnp.bfloat16)

        # ---- feed-forward ----
        inter = jnp.dot(y16, wi_ref[l], preferred_element_type=jnp.float32) \
            + bi_ref[l].astype(jnp.float32)
        # TODO(synk): HF XLM-R uses exact (erf) GELU; tanh-approx GELU used for Mosaic portability.
        inter = jax.nn.gelu(inter, approximate=True)
        ffn = jnp.dot(inter.astype(jnp.bfloat16), wf_ref[l],
                      preferred_element_type=jnp.float32) + bf_ref[l].astype(jnp.float32)

        # ---- fused residual add + LayerNorm 2 ----
        xf = layer_norm(ffn + y, ln2g_ref[l], ln2b_ref[l])
        x16 = xf.astype(jnp.bfloat16)

    # ---- classification head on the <s> token (row 0) ----
    cls16 = x16[0:1, :]                                                        # (1, H)
    hcls = jnp.dot(cls16, cw1_ref[...], preferred_element_type=jnp.float32) \
        + cb1_ref[...].astype(jnp.float32)
    hcls = jnp.tanh(hcls)
    logits = jnp.dot(hcls.astype(jnp.bfloat16), cw2_ref[...],
                     preferred_element_type=jnp.float32) \
        + cb2_ref[...].astype(jnp.float32)                                     # (1, NP)
    o_ref[0] = logits.astype(o_ref.dtype)


def fused_model(x, mask_f, p, cfg):
    """x: (B, S, H) bf16 embeddings (pre-LN); mask_f: (B, 1, S) f32.
    Returns lane-padded logits (B, 1, HEAD_PAD) bf16."""
    B, S, H = x.shape
    NP = p["out_proj_w"].shape[1]

    def rep(arr):  # full-block, grid-invariant spec (weights fetched once)
        n = arr.ndim
        return pl.BlockSpec(arr.shape, lambda b, n=n: (0,) * n)

    weights = [
        p["emb_ln_g"], p["emb_ln_b"],
        p["wqkv"], p["bqkv"], p["wo"], p["bo"],
        p["ln1_g"], p["ln1_b"], p["wi"], p["bi"], p["wf"], p["bf"],
        p["ln2_g"], p["ln2_b"],
        p["cls_dense_w"], p["cls_dense_b"], p["out_proj_w"], p["out_proj_b"],
    ]

    return pl.pallas_call(
        functools.partial(_model_kernel, cfg["num_layers"], cfg["num_heads"]),
        out_shape=jax.ShapeDtypeStruct((B, 1, NP), x.dtype),
        grid=(B,),
        in_specs=[
            pl.BlockSpec((1, S, H), lambda b: (b, 0, 0)),    # activations
            pl.BlockSpec((1, 1, S), lambda b: (b, 0, 0)),    # attention mask
        ] + [rep(w) for w in weights],
        out_specs=pl.BlockSpec((1, 1, NP), lambda b: (b, 0, 0)),
        compiler_params=pltpu.CompilerParams(dimension_semantics=("parallel",)),
    )(x, mask_f, *weights)


# --------------------------- parameters & forward ---------------------------

CFG = dict(
    vocab_size=100,
    hidden=32,
    num_layers=2,
    num_heads=2,
    intermediate=64,
    max_pos=24,
    pad_id=1,          # XLM-R padding_idx
    num_labels=3,      # feature_count
)


def init_params(key, cfg):
    """Weights generated in torch layout, then converted ONCE to kernel layouts
    (pre-transposed (in,out), per-head blocked, stacked over layers)."""
    H, I, nh, L = cfg["hidden"], cfg["intermediate"], cfg["num_heads"], cfg["num_layers"]
    Dh = H // nh
    std = 0.02

    def nrm(k, shape):
        return (jax.random.normal(k, shape, jnp.float32) * std).astype(jnp.bfloat16)

    keys = iter(jax.random.split(key, 5 + L * 6))

    params = dict(
        word_emb=nrm(next(keys), (cfg["vocab_size"], H)),
        pos_emb=nrm(next(keys), (cfg["max_pos"], H)),
        type_emb=nrm(next(keys), (1, H)),
        emb_ln_g=jnp.ones((1, H), jnp.bfloat16),
        emb_ln_b=jnp.zeros((1, H), jnp.bfloat16),
    )

    # classification head (torch (out,in) -> kernel (in,out), out_proj lane-padded to 128)
    cls_w = nrm(next(keys), (H, H))
    out_w = nrm(next(keys), (cfg["num_labels"], H))
    params["cls_dense_w"] = jnp.transpose(cls_w)                              # (H, H)
    params["cls_dense_b"] = jnp.zeros((1, H), jnp.bfloat16)
    params["out_proj_w"] = (
        jnp.zeros((H, HEAD_PAD), jnp.bfloat16)
        .at[:, : cfg["num_labels"]].set(jnp.transpose(out_w))
    )
    params["out_proj_b"] = jnp.zeros((1, HEAD_PAD), jnp.bfloat16)

    def per_head_cols(w):   # torch (out,in) -> (nh, in, Dh): column-block of W^T per head
        return jnp.transpose(w).reshape(H, nh, Dh).transpose(1, 0, 2)

    wqkv_l, wo_l, wi_l, wf_l = [], [], [], []
    for _ in range(L):
        wq, wk, wv = nrm(next(keys), (H, H)), nrm(next(keys), (H, H)), nrm(next(keys), (H, H))
        wo = nrm(next(keys), (H, H))
        wi = nrm(next(keys), (I, H))
        wf = nrm(next(keys), (H, I))
        wqkv_l.append(jnp.stack([per_head_cols(wq), per_head_cols(wk), per_head_cols(wv)], 0))
        wo_l.append(jnp.transpose(wo).reshape(nh, Dh, H))
        wi_l.append(jnp.transpose(wi))                                        # (H, I)
        wf_l.append(jnp.transpose(wf))                                        # (I, H)

    params.update(
        wqkv=jnp.stack(wqkv_l, 0),                          # (L, 3, nh, H, Dh)
        bqkv=jnp.zeros((L, 3, nh, 1, Dh), jnp.bfloat16),
        wo=jnp.stack(wo_l, 0),                              # (L, nh, Dh, H)
        bo=jnp.zeros((L, 1, H), jnp.bfloat16),
        ln1_g=jnp.ones((L, 1, H), jnp.bfloat16),
        ln1_b=jnp.zeros((L, 1, H), jnp.bfloat16),
        wi=jnp.stack(wi_l, 0),                              # (L, H, I)
        bi=jnp.zeros((L, 1, I), jnp.bfloat16),
        wf=jnp.stack(wf_l, 0),                              # (L, I, H)
        bf=jnp.zeros((L, 1, H), jnp.bfloat16),
        ln2_g=jnp.ones((L, 1, H), jnp.bfloat16),
        ln2_b=jnp.zeros((L, 1, H), jnp.bfloat16),
    )
    return params


def xlmroberta_forward(params, input_ids, attention_mask, cfg):
    """Returns classification logits (B, num_labels) bf16, matching
    XLMRobertaForSequenceClassification.forward(...).logits (eval, bf16 weights)."""
    B, S = input_ids.shape

    # --- embeddings (data-dependent gathers = plain-JAX glue) ---
    pad_mask = (input_ids != cfg["pad_id"]).astype(jnp.int32)
    position_ids = jnp.cumsum(pad_mask, axis=1) * pad_mask + cfg["pad_id"]
    wemb = params["word_emb"][input_ids]
    pemb = params["pos_emb"][position_ids]
    temb = params["type_emb"][0][None, None, :]            # token_type_ids == 0
    x = (wemb + pemb + temb).astype(jnp.bfloat16)          # (B, S, H), pre-LN

    # mask passed as (B, 1, S) float; additive bias is built inside the kernel
    mask_f = attention_mask.astype(jnp.float32).reshape(B, 1, S)

    # --- whole model (embed-LN -> L encoder layers -> cls head) in ONE pallas_call ---
    logits_padded = fused_model(x, mask_f, params, cfg)    # (B, 1, HEAD_PAD) bf16
    return logits_padded[:, 0, : cfg["num_labels"]]        # (B, num_labels) bf16


# --------------------------------- main -------------------------------------

if __name__ == "__main__":
    key = jax.random.PRNGKey(0)
    k_param, k_ids = jax.random.split(key)

    B, S = 2, 8
    params = init_params(k_param, CFG)

    input_ids = jax.random.randint(k_ids, (B, S), 2, CFG["vocab_size"], dtype=jnp.int32)
    # pad the tail of the second sequence to exercise masking
    input_ids = input_ids.at[1, -2:].set(CFG["pad_id"])
    attention_mask = jnp.ones((B, S), jnp.int32).at[1, -2:].set(0)

    forward = jax.jit(lambda p, ids, m: xlmroberta_forward(p, ids, m, CFG))
    logits = forward(params, input_ids, attention_mask)
    jax.block_until_ready(logits)

    assert logits.shape == (B, CFG["num_labels"])
    assert logits.dtype == jnp.bfloat16
    print("KERNEL_OK")
</pallas_src>

<mosaic_0001>
module attributes {stable_mosaic.version = 11 : i64} {
  func.func @_model_kernel(%arg0: i32, %arg1: memref<1x8x32xbf16, #tpu.memory_space<vmem>>, %arg2: memref<1x1x8xf32, #tpu.memory_space<vmem>>, %arg3: memref<1x32xbf16, #tpu.memory_space<vmem>>, %arg4: memref<1x32xbf16, #tpu.memory_space<vmem>>, %arg5: memref<2x3x2x32x16xbf16, #tpu.memory_space<vmem>>, %arg6: memref<2x3x2x1x16xbf16, #tpu.memory_space<vmem>>, %arg7: memref<2x2x16x32xbf16, #tpu.memory_space<vmem>>, %arg8: memref<2x1x32xbf16, #tpu.memory_space<vmem>>, %arg9: memref<2x1x32xbf16, #tpu.memory_space<vmem>>, %arg10: memref<2x1x32xbf16, #tpu.memory_space<vmem>>, %arg11: memref<2x32x64xbf16, #tpu.memory_space<vmem>>, %arg12: memref<2x1x64xbf16, #tpu.memory_space<vmem>>, %arg13: memref<2x64x32xbf16, #tpu.memory_space<vmem>>, %arg14: memref<2x1x32xbf16, #tpu.memory_space<vmem>>, %arg15: memref<2x1x32xbf16, #tpu.memory_space<vmem>>, %arg16: memref<2x1x32xbf16, #tpu.memory_space<vmem>>, %arg17: memref<32x32xbf16, #tpu.memory_space<vmem>>, %arg18: memref<1x32xbf16, #tpu.memory_space<vmem>>, %arg19: memref<32x128xbf16, #tpu.memory_space<vmem>>, %arg20: memref<1x128xbf16, #tpu.memory_space<vmem>>, %arg21: memref<1x1x128xbf16, #tpu.memory_space<vmem>>) attributes {dimension_semantics = [#tpu.dimension_semantics<parallel>], iteration_bounds = array<i64: 2>, scalar_prefetch = 0 : i64, scratch_operands = 0 : i64, tpu.core_type = #tpu.core_type<tc>, window_params = [{transform_indices = @transform_0, window_bounds = array<i64: 1, 8, 32>}, {transform_indices = @transform_1, window_bounds = array<i64: 1, 1, 8>}, {pipeline_mode = #tpu.pipeline_mode<synchronous>, transform_indices = @transform_2, window_bounds = array<i64: 1, 32>}, {pipeline_mode = #tpu.pipeline_mode<synchronous>, transform_indices = @transform_3, window_bounds = array<i64: 1, 32>}, {pipeline_mode = #tpu.pipeline_mode<synchronous>, transform_indices = @transform_4, window_bounds = array<i64: 2, 3, 2, 32, 16>}, {pipeline_mode = #tpu.pipeline_mode<synchronous>, transform_indices = @transform_5, window_bounds = array<i64: 2, 3, 2, 1, 16>}, {pipeline_mode = #tpu.pipeline_mode<synchronous>, transform_indices = @transform_6, window_bounds = array<i64: 2, 2, 16, 32>}, {pipeline_mode = #tpu.pipeline_mode<synchronous>, transform_indices = @transform_7, window_bounds = array<i64: 2, 1, 32>}, {pipeline_mode = #tpu.pipeline_mode<synchronous>, transform_indices = @transform_8, window_bounds = array<i64: 2, 1, 32>}, {pipeline_mode = #tpu.pipeline_mode<synchronous>, transform_indices = @transform_9, window_bounds = array<i64: 2, 1, 32>}, {pipeline_mode = #tpu.pipeline_mode<synchronous>, transform_indices = @transform_10, window_bounds = array<i64: 2, 32, 64>}, {pipeline_mode = #tpu.pipeline_mode<synchronous>, transform_indices = @transform_11, window_bounds = array<i64: 2, 1, 64>}, {pipeline_mode = #tpu.pipeline_mode<synchronous>, transform_indices = @transform_12, window_bounds = array<i64: 2, 64, 32>}, {pipeline_mode = #tpu.pipeline_mode<synchronous>, transform_indices = @transform_13, window_bounds = array<i64: 2, 1, 32>}, {pipeline_mode = #tpu.pipeline_mode<synchronous>, transform_indices = @transform_14, window_bounds = array<i64: 2, 1, 32>}, {pipeline_mode = #tpu.pipeline_mode<synchronous>, transform_indices = @transform_15, window_bounds = array<i64: 2, 1, 32>}, {pipeline_mode = #tpu.pipeline_mode<synchronous>, transform_indices = @transform_16, window_bounds = array<i64: 32, 32>}, {pipeline_mode = #tpu.pipeline_mode<synchronous>, transform_indices = @transform_17, window_bounds = array<i64: 1, 32>}, {pipeline_mode = #tpu.pipeline_mode<synchronous>, transform_indices = @transform_18, window_bounds = array<i64: 32, 128>}, {pipeline_mode = #tpu.pipeline_mode<synchronous>, transform_indices = @transform_19, window_bounds = array<i64: 1, 128>}, {transform_indices = @transform_20, window_bounds = array<i64: 1, 1, 128>}]} {
    %c0 = arith.constant 0 : index
    %c0_0 = arith.constant 0 : index
    %c0_1 = arith.constant 0 : index
    %0 = vector.load %arg1[%c0, %c0_0, %c0_1] : memref<1x8x32xbf16, #tpu.memory_space<vmem>>, vector<1x8x32xbf16>
    %1 = vector.shape_cast %0 : vector<1x8x32xbf16> to vector<8x32xbf16>
    %2 = arith.extf %1 : vector<8x32xbf16> to vector<8x32xf32>
    %c0_2 = arith.constant 0 : index
    %c0_3 = arith.constant 0 : index
    %3 = vector.load %arg3[%c0_2, %c0_3] : memref<1x32xbf16, #tpu.memory_space<vmem>>, vector<1x32xbf16>
    %c0_4 = arith.constant 0 : index
    %c0_5 = arith.constant 0 : index
    %4 = vector.load %arg4[%c0_4, %c0_5] : memref<1x32xbf16, #tpu.memory_space<vmem>>, vector<1x32xbf16>
    %cst = arith.constant dense<0.000000e+00> : vector<8xf32>
    %5 = vector.multi_reduction <add>, %2, %cst [1] : vector<8x32xf32> to vector<8xf32>
    %6 = vector.shape_cast %5 : vector<8xf32> to vector<8x1xf32>
    %cst_6 = arith.constant 3.200000e+01 : f32
    %7 = vector.broadcast %cst_6 : f32 to vector<8x1xf32>
    %8 = arith.divf %6, %7 : vector<8x1xf32>
    %9 = vector.broadcast %8 : vector<8x1xf32> to vector<8x32xf32>
    %10 = arith.subf %2, %9 : vector<8x32xf32>
    %11 = vector.broadcast %8 : vector<8x1xf32> to vector<8x32xf32>
    %12 = arith.subf %2, %11 : vector<8x32xf32>
    %13 = arith.mulf %10, %12 : vector<8x32xf32>
    %cst_7 = arith.constant dense<0.000000e+00> : vector<8xf32>
    %14 = vector.multi_reduction <add>, %13, %cst_7 [1] : vector<8x32xf32> to vector<8xf32>
    %15 = vector.shape_cast %14 : vector<8xf32> to vector<8x1xf32>
    %cst_8 = arith.constant 3.200000e+01 : f32
    %16 = vector.broadcast %cst_8 : f32 to vector<8x1xf32>
    %17 = arith.divf %15, %16 : vector<8x1xf32>
    %18 = vector.broadcast %8 : vector<8x1xf32> to vector<8x32xf32>
    %19 = arith.subf %2, %18 : vector<8x32xf32>
    %cst_9 = arith.constant 9.99999974E-6 : f32
    %20 = vector.broadcast %cst_9 : f32 to vector<8x1xf32>
    %21 = arith.addf %17, %20 : vector<8x1xf32>
    %22 = math.rsqrt %21 : vector<8x1xf32>
    %23 = vector.broadcast %22 : vector<8x1xf32> to vector<8x32xf32>
    %24 = arith.mulf %19, %23 : vector<8x32xf32>
    %25 = arith.extf %3 : vector<1x32xbf16> to vector<1x32xf32>
    %26 = vector.broadcast %25 : vector<1x32xf32> to vector<8x32xf32>
    %27 = arith.mulf %24, %26 : vector<8x32xf32>
    %28 = arith.extf %4 : vector<1x32xbf16> to vector<1x32xf32>
    %29 = vector.broadcast %28 : vector<1x32xf32> to vector<8x32xf32>
    %30 = arith.addf %27, %29 : vector<8x32xf32>
    %31 = arith.truncf %30 : vector<8x32xf32> to vector<8x32xbf16>
    %c0_10 = arith.constant 0 : index
    %c0_11 = arith.constant 0 : index
    %c0_12 = arith.constant 0 : index
    %32 = vector.load %arg2[%c0_10, %c0_11, %c0_12] : memref<1x1x8xf32, #tpu.memory_space<vmem>>, vector<1x1x8xf32>
    %33 = vector.shape_cast %32 : vector<1x1x8xf32> to vector<1x8xf32>
    %cst_13 = arith.constant 1.000000e+00 : f32
    %34 = vector.broadcast %cst_13 : f32 to vector<1x8xf32>
    %35 = arith.subf %34, %33 : vector<1x8xf32>
    %cst_14 = arith.constant -1.000000e+09 : f32
    %36 = vector.broadcast %cst_14 : f32 to vector<1x8xf32>
    %37 = arith.mulf %35, %36 : vector<1x8xf32>
    %c0_15 = arith.constant 0 : index
    %c0_16 = arith.constant 0 : index
    %c0_17 = arith.constant 0 : index
    %c0_18 = arith.constant 0 : index
    %c0_19 = arith.constant 0 : index
    %38 = vector.load %arg5[%c0_15, %c0_16, %c0_17, %c0_18, %c0_19] : memref<2x3x2x32x16xbf16, #tpu.memory_space<vmem>>, vector<1x1x1x32x16xbf16>
    %39 = vector.shape_cast %38 : vector<1x1x1x32x16xbf16> to vector<32x16xbf16>
    %cst_20 = arith.constant dense<0.000000e+00> : vector<8x16xf32>
    %40 = tpu.matmul %31, %39, %cst_20 {dimension_numbers = #tpu.dot_dimension_numbers<[1], [0], [0], [1], [0, 0, 1, 1], [], []>} : vector<8x32xbf16>, vector<32x16xbf16>, vector<8x16xf32> -> vector<8x16xf32>
    %c0_21 = arith.constant 0 : index
    %c0_22 = arith.constant 0 : index
    %c0_23 = arith.constant 0 : index
    %c0_24 = arith.constant 0 : index
    %c0_25 = arith.constant 0 : index
    %41 = vector.load %arg6[%c0_21, %c0_22, %c0_23, %c0_24, %c0_25] : memref<2x3x2x1x16xbf16, #tpu.memory_space<vmem>>, vector<1x1x1x1x16xbf16>
    %42 = vector.shape_cast %41 : vector<1x1x1x1x16xbf16> to vector<1x16xbf16>
    %43 = arith.extf %42 : vector<1x16xbf16> to vector<1x16xf32>
    %44 = vector.broadcast %43 : vector<1x16xf32> to vector<8x16xf32>
    %45 = arith.addf %40, %44 : vector<8x16xf32>
    %c0_26 = arith.constant 0 : index
    %c1 = arith.constant 1 : index
    %c0_27 = arith.constant 0 : index
    %c0_28 = arith.constant 0 : index
    %c0_29 = arith.constant 0 : index
    %46 = vector.load %arg5[%c0_26, %c1, %c0_27, %c0_28, %c0_29] : memref<2x3x2x32x16xbf16, #tpu.memory_space<vmem>>, vector<1x1x1x32x16xbf16>
    %47 = vector.shape_cast %46 : vector<1x1x1x32x16xbf16> to vector<32x16xbf16>
    %cst_30 = arith.constant dense<0.000000e+00> : vector<8x16xf32>
    %48 = tpu.matmul %31, %47, %cst_30 {dimension_numbers = #tpu.dot_dimension_numbers<[1], [0], [0], [1], [0, 0, 1, 1], [], []>} : vector<8x32xbf16>, vector<32x16xbf16>, vector<8x16xf32> -> vector<8x16xf32>
    %c0_31 = arith.constant 0 : index
    %c1_32 = arith.constant 1 : index
    %c0_33 = arith.constant 0 : index
    %c0_34 = arith.constant 0 : index
    %c0_35 = arith.constant 0 : index
    %49 = vector.load %arg6[%c0_31, %c1_32, %c0_33, %c0_34, %c0_35] : memref<2x3x2x1x16xbf16, #tpu.memory_space<vmem>>, vector<1x1x1x1x16xbf16>
    %50 = vector.shape_cast %49 : vector<1x1x1x1x16xbf16> to vector<1x16xbf16>
    %51 = arith.extf %50 : vector<1x16xbf16> to vector<1x16xf32>
    %52 = vector.broadcast %51 : vector<1x16xf32> to vector<8x16xf32>
    %53 = arith.addf %48, %52 : vector<8x16xf32>
    %c0_36 = arith.constant 0 : index
    %c2 = arith.constant 2 : index
    %c0_37 = arith.constant 0 : index
    %c0_38 = arith.constant 0 : index
    %c0_39 = arith.constant 0 : index
    %54 = vector.load %arg5[%c0_36, %c2, %c0_37, %c0_38, %c0_39] : memref<2x3x2x32x16xbf16, #tpu.memory_space<vmem>>, vector<1x1x1x32x16xbf16>
    %55 = vector.shape_cast %54 : vector<1x1x1x32x16xbf16> to vector<32x16xbf16>
    %cst_40 = arith.constant dense<0.000000e+00> : vector<8x16xf32>
    %56 = tpu.matmul %31, %55, %cst_40 {dimension_numbers = #tpu.dot_dimension_numbers<[1], [0], [0], [1], [0, 0, 1, 1], [], []>} : vector<8x32xbf16>, vector<32x16xbf16>, vector<8x16xf32> -> vector<8x16xf32>
    %c0_41 = arith.constant 0 : index
    %c2_42 = arith.constant 2 : index
    %c0_43 = arith.constant 0 : index
    %c0_44 = arith.constant 0 : index
    %c0_45 = arith.constant 0 : index
    %57 = vector.load %arg6[%c0_41, %c2_42, %c0_43, %c0_44, %c0_45] : memref<2x3x2x1x16xbf16, #tpu.memory_space<vmem>>, vector<1x1x1x1x16xbf16>
    %58 = vector.shape_cast %57 : vector<1x1x1x1x16xbf16> to vector<1x16xbf16>
    %59 = arith.extf %58 : vector<1x16xbf16> to vector<1x16xf32>
    %60 = vector.broadcast %59 : vector<1x16xf32> to vector<8x16xf32>
    %61 = arith.addf %56, %60 : vector<8x16xf32>
    %cst_46 = arith.constant 2.500000e-01 : f32
    %62 = vector.broadcast %cst_46 : f32 to vector<8x16xf32>
    %63 = arith.mulf %45, %62 : vector<8x16xf32>
    %64 = arith.truncf %63 : vector<8x16xf32> to vector<8x16xbf16>
    %65 = arith.truncf %53 : vector<8x16xf32> to vector<8x16xbf16>
    %66 = arith.truncf %61 : vector<8x16xf32> to vector<8x16xbf16>
    %cst_47 = arith.constant dense<0.000000e+00> : vector<8x8xf32>
    %67 = tpu.matmul %64, %65, %cst_47 {dimension_numbers = #tpu.dot_dimension_numbers<[1], [1], [0], [0], [0, 0, 1, 0], [], []>} : vector<8x16xbf16>, vector<8x16xbf16>, vector<8x8xf32> -> vector<8x8xf32>
    %68 = vector.broadcast %37 : vector<1x8xf32> to vector<8x8xf32>
    %69 = arith.addf %67, %68 : vector<8x8xf32>
    %cst_48 = arith.constant dense<0xFF800000> : vector<8xf32>
    %70 = vector.multi_reduction <maximumf>, %69, %cst_48 [1] : vector<8x8xf32> to vector<8xf32>
    %71 = vector.shape_cast %70 : vector<8xf32> to vector<8x1xf32>
    %72 = vector.broadcast %71 : vector<8x1xf32> to vector<8x8xf32>
    %73 = arith.subf %69, %72 : vector<8x8xf32>
    %74 = math.exp %73 : vector<8x8xf32>
    %cst_49 = arith.constant dense<0.000000e+00> : vector<8xf32>
    %75 = vector.multi_reduction <add>, %74, %cst_49 [1] : vector<8x8xf32> to vector<8xf32>
    %76 = vector.shape_cast %75 : vector<8xf32> to vector<8x1xf32>
    %77 = tpu.reciprocal %76 {approx = true} : vector<8x1xf32> -> vector<8x1xf32>
    %78 = vector.broadcast %77 : vector<8x1xf32> to vector<8x8xf32>
    %79 = arith.mulf %74, %78 : vector<8x8xf32>
    %80 = arith.truncf %79 : vector<8x8xf32> to vector<8x8xbf16>
    %cst_50 = arith.constant dense<0.000000e+00> : vector<8x16xf32>
    %81 = tpu.matmul %80, %66, %cst_50 {dimension_numbers = #tpu.dot_dimension_numbers<[1], [0], [0], [1], [0, 0, 1, 1], [], []>} : vector<8x8xbf16>, vector<8x16xbf16>, vector<8x16xf32> -> vector<8x16xf32>
    %82 = arith.truncf %81 : vector<8x16xf32> to vector<8x16xbf16>
    %c0_51 = arith.constant 0 : index
    %c0_52 = arith.constant 0 : index
    %c0_53 = arith.constant 0 : index
    %c0_54 = arith.constant 0 : index
    %83 = vector.load %arg7[%c0_51, %c0_52, %c0_53, %c0_54] : memref<2x2x16x32xbf16, #tpu.memory_space<vmem>>, vector<1x1x16x32xbf16>
    %84 = vector.shape_cast %83 : vector<1x1x16x32xbf16> to vector<16x32xbf16>
    %cst_55 = arith.constant dense<0.000000e+00> : vector<8x32xf32>
    %85 = tpu.matmul %82, %84, %cst_55 {dimension_numbers = #tpu.dot_dimension_numbers<[1], [0], [0], [1], [0, 0, 1, 1], [], []>} : vector<8x16xbf16>, vector<16x32xbf16>, vector<8x32xf32> -> vector<8x32xf32>
    %c0_56 = arith.constant 0 : index
    %c0_57 = arith.constant 0 : index
    %c1_58 = arith.constant 1 : index
    %c0_59 = arith.constant 0 : index
    %c0_60 = arith.constant 0 : index
    %86 = vector.load %arg5[%c0_56, %c0_57, %c1_58, %c0_59, %c0_60] : memref<2x3x2x32x16xbf16, #tpu.memory_space<vmem>>, vector<1x1x1x32x16xbf16>
    %87 = vector.shape_cast %86 : vector<1x1x1x32x16xbf16> to vector<32x16xbf16>
    %cst_61 = arith.constant dense<0.000000e+00> : vector<8x16xf32>
    %88 = tpu.matmul %31, %87, %cst_61 {dimension_numbers = #tpu.dot_dimension_numbers<[1], [0], [0], [1], [0, 0, 1, 1], [], []>} : vector<8x32xbf16>, vector<32x16xbf16>, vector<8x16xf32> -> vector<8x16xf32>
    %c0_62 = arith.constant 0 : index
    %c0_63 = arith.constant 0 : index
    %c1_64 = arith.constant 1 : index
    %c0_65 = arith.constant 0 : index
    %c0_66 = arith.constant 0 : index
    %89 = vector.load %arg6[%c0_62, %c0_63, %c1_64, %c0_65, %c0_66] : memref<2x3x2x1x16xbf16, #tpu.memory_space<vmem>>, vector<1x1x1x1x16xbf16>
    %90 = vector.shape_cast %89 : vector<1x1x1x1x16xbf16> to vector<1x16xbf16>
    %91 = arith.extf %90 : vector<1x16xbf16> to vector<1x16xf32>
    %92 = vector.broadcast %91 : vector<1x16xf32> to vector<8x16xf32>
    %93 = arith.addf %88, %92 : vector<8x16xf32>
    %c0_67 = arith.constant 0 : index
    %c1_68 = arith.constant 1 : index
    %c1_69 = arith.constant 1 : index
    %c0_70 = arith.constant 0 : index
    %c0_71 = arith.constant 0 : index
    %94 = vector.load %arg5[%c0_67, %c1_68, %c1_69, %c0_70, %c0_71] : memref<2x3x2x32x16xbf16, #tpu.memory_space<vmem>>, vector<1x1x1x32x16xbf16>
    %95 = vector.shape_cast %94 : vector<1x1x1x32x16xbf16> to vector<32x16xbf16>
    %cst_72 = arith.constant dense<0.000000e+00> : vector<8x16xf32>
    %96 = tpu.matmul %31, %95, %cst_72 {dimension_numbers = #tpu.dot_dimension_numbers<[1], [0], [0], [1], [0, 0, 1, 1], [], []>} : vector<8x32xbf16>, vector<32x16xbf16>, vector<8x16xf32> -> vector<8x16xf32>
    %c0_73 = arith.constant 0 : index
    %c1_74 = arith.constant 1 : index
    %c1_75 = arith.constant 1 : index
    %c0_76 = arith.constant 0 : index
    %c0_77 = arith.constant 0 : index
    %97 = vector.load %arg6[%c0_73, %c1_74, %c1_75, %c0_76, %c0_77] : memref<2x3x2x1x16xbf16, #tpu.memory_space<vmem>>, vector<1x1x1x1x16xbf16>
    %98 = vector.shape_cast %97 : vector<1x1x1x1x16xbf16> to vector<1x16xbf16>
    %99 = arith.extf %98 : vector<1x16xbf16> to vector<1x16xf32>
    %100 = vector.broadcast %99 : vector<1x16xf32> to vector<8x16xf32>
    %101 = arith.addf %96, %100 : vector<8x16xf32>
    %c0_78 = arith.constant 0 : index
    %c2_79 = arith.constant 2 : index
    %c1_80 = arith.constant 1 : index
    %c0_81 = arith.constant 0 : index
    %c0_82 = arith.constant 0 : index
    %102 = vector.load %arg5[%c0_78, %c2_79, %c1_80, %c0_81, %c0_82] : memref<2x3x2x32x16xbf16, #tpu.memory_space<vmem>>, vector<1x1x1x32x16xbf16>
    %103 = vector.shape_cast %102 : vector<1x1x1x32x16xbf16> to vector<32x16xbf16>
    %cst_83 = arith.constant dense<0.000000e+00> : vector<8x16xf32>
    %104 = tpu.matmul %31, %103, %cst_83 {dimension_numbers = #tpu.dot_dimension_numbers<[1], [0], [0], [1], [0, 0, 1, 1], [], []>} : vector<8x32xbf16>, vector<32x16xbf16>, vector<8x16xf32> -> vector<8x16xf32>
    %c0_84 = arith.constant 0 : index
    %c2_85 = arith.constant 2 : index
    %c1_86 = arith.constant 1 : index
    %c0_87 = arith.constant 0 : index
    %c0_88 = arith.constant 0 : index
    %105 = vector.load %arg6[%c0_84, %c2_85, %c1_86, %c0_87, %c0_88] : memref<2x3x2x1x16xbf16, #tpu.memory_space<vmem>>, vector<1x1x1x1x16xbf16>
    %106 = vector.shape_cast %105 : vector<1x1x1x1x16xbf16> to vector<1x16xbf16>
    %107 = arith.extf %106 : vector<1x16xbf16> to vector<1x16xf32>
    %108 = vector.broadcast %107 : vector<1x16xf32> to vector<8x16xf32>
    %109 = arith.addf %104, %108 : vector<8x16xf32>
    %cst_89 = arith.constant 2.500000e-01 : f32
    %110 = vector.broadcast %cst_89 : f32 to vector<8x16xf32>
    %111 = arith.mulf %93, %110 : vector<8x16xf32>
    %112 = arith.truncf %111 : vector<8x16xf32> to vector<8x16xbf16>
    %113 = arith.truncf %101 : vector<8x16xf32> to vector<8x16xbf16>
    %114 = arith.truncf %109 : vector<8x16xf32> to vector<8x16xbf16>
    %cst_90 = arith.constant dense<0.000000e+00> : vector<8x8xf32>
    %115 = tpu.matmul %112, %113, %cst_90 {dimension_numbers = #tpu.dot_dimension_numbers<[1], [1], [0], [0], [0, 0, 1, 0], [], []>} : vector<8x16xbf16>, vector<8x16xbf16>, vector<8x8xf32> -> vector<8x8xf32>
    %116 = vector.broadcast %37 : vector<1x8xf32> to vector<8x8xf32>
    %117 = arith.addf %115, %116 : vector<8x8xf32>
    %cst_91 = arith.constant dense<0xFF800000> : vector<8xf32>
    %118 = vector.multi_reduction <maximumf>, %117, %cst_91 [1] : vector<8x8xf32> to vector<8xf32>
    %119 = vector.shape_cast %118 : vector<8xf32> to vector<8x1xf32>
    %120 = vector.broadcast %119 : vector<8x1xf32> to vector<8x8xf32>
    %121 = arith.subf %117, %120 : vector<8x8xf32>
    %122 = math.exp %121 : vector<8x8xf32>
    %cst_92 = arith.constant dense<0.000000e+00> : vector<8xf32>
    %123 = vector.multi_reduction <add>, %122, %cst_92 [1] : vector<8x8xf32> to vector<8xf32>
    %124 = vector.shape_cast %123 : vector<8xf32> to vector<8x1xf32>
    %125 = tpu.reciprocal %124 {approx = true} : vector<8x1xf32> -> vector<8x1xf32>
    %126 = vector.broadcast %125 : vector<8x1xf32> to vector<8x8xf32>
    %127 = arith.mulf %122, %126 : vector<8x8xf32>
    %128 = arith.truncf %127 : vector<8x8xf32> to vector<8x8xbf16>
    %cst_93 = arith.constant dense<0.000000e+00> : vector<8x16xf32>
    %129 = tpu.matmul %128, %114, %cst_93 {dimension_numbers = #tpu.dot_dimension_numbers<[1], [0], [0], [1], [0, 0, 1, 1], [], []>} : vector<8x8xbf16>, vector<8x16xbf16>, vector<8x16xf32> -> vector<8x16xf32>
    %130 = arith.truncf %129 : vector<8x16xf32> to vector<8x16xbf16>
    %c0_94 = arith.constant 0 : index
    %c1_95 = arith.constant 1 : index
    %c0_96 = arith.constant 0 : index
    %c0_97 = arith.constant 0 : index
    %131 = vector.load %arg7[%c0_94, %c1_95, %c0_96, %c0_97] : memref<2x2x16x32xbf16, #tpu.memory_space<vmem>>, vector<1x1x16x32xbf16>
    %132 = vector.shape_cast %131 : vector<1x1x16x32xbf16> to vector<16x32xbf16>
    %cst_98 = arith.constant dense<0.000000e+00> : vector<8x32xf32>
    %133 = tpu.matmul %130, %132, %cst_98 {dimension_numbers = #tpu.dot_dimension_numbers<[1], [0], [0], [1], [0, 0, 1, 1], [], []>} : vector<8x16xbf16>, vector<16x32xbf16>, vector<8x32xf32> -> vector<8x32xf32>
    %134 = arith.addf %85, %133 : vector<8x32xf32>
    %c0_99 = arith.constant 0 : index
    %c0_100 = arith.constant 0 : index
    %c0_101 = arith.constant 0 : index
    %135 = vector.load %arg8[%c0_99, %c0_100, %c0_101] : memref<2x1x32xbf16, #tpu.memory_space<vmem>>, vector<1x1x32xbf16>
    %136 = vector.shape_cast %135 : vector<1x1x32xbf16> to vector<1x32xbf16>
    %137 = arith.extf %136 : vector<1x32xbf16> to vector<1x32xf32>
    %138 = vector.broadcast %137 : vector<1x32xf32> to vector<8x32xf32>
    %139 = arith.addf %134, %138 : vector<8x32xf32>
    %140 = arith.addf %139, %30 : vector<8x32xf32>
    %c0_102 = arith.constant 0 : index
    %c0_103 = arith.constant 0 : index
    %c0_104 = arith.constant 0 : index
    %141 = vector.load %arg9[%c0_102, %c0_103, %c0_104] : memref<2x1x32xbf16, #tpu.memory_space<vmem>>, vector<1x1x32xbf16>
    %142 = vector.shape_cast %141 : vector<1x1x32xbf16> to vector<1x32xbf16>
    %c0_105 = arith.constant 0 : index
    %c0_106 = arith.constant 0 : index
    %c0_107 = arith.constant 0 : index
    %143 = vector.load %arg10[%c0_105, %c0_106, %c0_107] : memref<2x1x32xbf16, #tpu.memory_space<vmem>>, vector<1x1x32xbf16>
    %144 = vector.shape_cast %143 : vector<1x1x32xbf16> to vector<1x32xbf16>
    %cst_108 = arith.constant dense<0.000000e+00> : vector<8xf32>
    %145 = vector.multi_reduction <add>, %140, %cst_108 [1] : vector<8x32xf32> to vector<8xf32>
    %146 = vector.shape_cast %145 : vector<8xf32> to vector<8x1xf32>
    %cst_109 = arith.constant 3.200000e+01 : f32
    %147 = vector.broadcast %cst_109 : f32 to vector<8x1xf32>
    %148 = arith.divf %146, %147 : vector<8x1xf32>
    %149 = vector.broadcast %148 : vector<8x1xf32> to vector<8x32xf32>
    %150 = arith.subf %140, %149 : vector<8x32xf32>
    %151 = vector.broadcast %148 : vector<8x1xf32> to vector<8x32xf32>
    %152 = arith.subf %140, %151 : vector<8x32xf32>
    %153 = arith.mulf %150, %152 : vector<8x32xf32>
    %cst_110 = arith.constant dense<0.000000e+00> : vector<8xf32>
    %154 = vector.multi_reduction <add>, %153, %cst_110 [1] : vector<8x32xf32> to vector<8xf32>
    %155 = vector.shape_cast %154 : vector<8xf32> to vector<8x1xf32>
    %cst_111 = arith.constant 3.200000e+01 : f32
    %156 = vector.broadcast %cst_111 : f32 to vector<8x1xf32>
    %157 = arith.divf %155, %156 : vector<8x1xf32>
    %158 = vector.broadcast %148 : vector<8x1xf32> to vector<8x32xf32>
    %159 = arith.subf %140, %158 : vector<8x32xf32>
    %cst_112 = arith.constant 9.99999974E-6 : f32
    %160 = vector.broadcast %cst_112 : f32 to vector<8x1xf32>
    %161 = arith.addf %157, %160 : vector<8x1xf32>
    %162 = math.rsqrt %161 : vector<8x1xf32>
    %163 = vector.broadcast %162 : vector<8x1xf32> to vector<8x32xf32>
    %164 = arith.mulf %159, %163 : vector<8x32xf32>
    %165 = arith.extf %142 : vector<1x32xbf16> to vector<1x32xf32>
    %166 = vector.broadcast %165 : vector<1x32xf32> to vector<8x32xf32>
    %167 = arith.mulf %164, %166 : vector<8x32xf32>
    %168 = arith.extf %144 : vector<1x32xbf16> to vector<1x32xf32>
    %169 = vector.broadcast %168 : vector<1x32xf32> to vector<8x32xf32>
    %170 = arith.addf %167, %169 : vector<8x32xf32>
    %171 = arith.truncf %170 : vector<8x32xf32> to vector<8x32xbf16>
    %c0_113 = arith.constant 0 : index
    %c0_114 = arith.constant 0 : index
    %c0_115 = arith.constant 0 : index
    %172 = vector.load %arg11[%c0_113, %c0_114, %c0_115] : memref<2x32x64xbf16, #tpu.memory_space<vmem>>, vector<1x32x64xbf16>
    %173 = vector.shape_cast %172 : vector<1x32x64xbf16> to vector<32x64xbf16>
    %cst_116 = arith.constant dense<0.000000e+00> : vector<8x64xf32>
    %174 = tpu.matmul %171, %173, %cst_116 {dimension_numbers = #tpu.dot_dimension_numbers<[1], [0], [0], [1], [0, 0, 1, 1], [], []>} : vector<8x32xbf16>, vector<32x64xbf16>, vector<8x64xf32> -> vector<8x64xf32>
    %c0_117 = arith.constant 0 : index
    %c0_118 = arith.constant 0 : index
    %c0_119 = arith.constant 0 : index
    %175 = vector.load %arg12[%c0_117, %c0_118, %c0_119] : memref<2x1x64xbf16, #tpu.memory_space<vmem>>, vector<1x1x64xbf16>
    %176 = vector.shape_cast %175 : vector<1x1x64xbf16> to vector<1x64xbf16>
    %177 = arith.extf %176 : vector<1x64xbf16> to vector<1x64xf32>
    %178 = vector.broadcast %177 : vector<1x64xf32> to vector<8x64xf32>
    %179 = arith.addf %174, %178 : vector<8x64xf32>
    %180 = arith.mulf %179, %179 : vector<8x64xf32>
    %181 = arith.mulf %179, %180 : vector<8x64xf32>
    %cst_120 = arith.constant 4.471500e-02 : f32
    %182 = vector.broadcast %cst_120 : f32 to vector<8x64xf32>
    %183 = arith.mulf %182, %181 : vector<8x64xf32>
    %184 = arith.addf %179, %183 : vector<8x64xf32>
    %cst_121 = arith.constant 0.797884583 : f32
    %185 = vector.broadcast %cst_121 : f32 to vector<8x64xf32>
    %186 = arith.mulf %185, %184 : vector<8x64xf32>
    %187 = math.tanh %186 : vector<8x64xf32>
    %cst_122 = arith.constant 1.000000e+00 : f32
    %188 = vector.broadcast %cst_122 : f32 to vector<8x64xf32>
    %189 = arith.addf %188, %187 : vector<8x64xf32>
    %cst_123 = arith.constant 5.000000e-01 : f32
    %190 = vector.broadcast %cst_123 : f32 to vector<8x64xf32>
    %191 = arith.mulf %190, %189 : vector<8x64xf32>
    %192 = arith.mulf %179, %191 : vector<8x64xf32>
    %193 = arith.truncf %192 : vector<8x64xf32> to vector<8x64xbf16>
    %c0_124 = arith.constant 0 : index
    %c0_125 = arith.constant 0 : index
    %c0_126 = arith.constant 0 : index
    %194 = vector.load %arg13[%c0_124, %c0_125, %c0_126] : memref<2x64x32xbf16, #tpu.memory_space<vmem>>, vector<1x64x32xbf16>
    %195 = vector.shape_cast %194 : vector<1x64x32xbf16> to vector<64x32xbf16>
    %cst_127 = arith.constant dense<0.000000e+00> : vector<8x32xf32>
    %196 = tpu.matmul %193, %195, %cst_127 {dimension_numbers = #tpu.dot_dimension_numbers<[1], [0], [0], [1], [0, 0, 1, 1], [], []>} : vector<8x64xbf16>, vector<64x32xbf16>, vector<8x32xf32> -> vector<8x32xf32>
    %c0_128 = arith.constant 0 : index
    %c0_129 = arith.constant 0 : index
    %c0_130 = arith.constant 0 : index
    %197 = vector.load %arg14[%c0_128, %c0_129, %c0_130] : memref<2x1x32xbf16, #tpu.memory_space<vmem>>, vector<1x1x32xbf16>
    %198 = vector.shape_cast %197 : vector<1x1x32xbf16> to vector<1x32xbf16>
    %199 = arith.extf %198 : vector<1x32xbf16> to vector<1x32xf32>
    %200 = vector.broadcast %199 : vector<1x32xf32> to vector<8x32xf32>
    %201 = arith.addf %196, %200 : vector<8x32xf32>
    %202 = arith.addf %201, %170 : vector<8x32xf32>
    %c0_131 = arith.constant 0 : index
    %c0_132 = arith.constant 0 : index
    %c0_133 = arith.constant 0 : index
    %203 = vector.load %arg15[%c0_131, %c0_132, %c0_133] : memref<2x1x32xbf16, #tpu.memory_space<vmem>>, vector<1x1x32xbf16>
    %204 = vector.shape_cast %203 : vector<1x1x32xbf16> to vector<1x32xbf16>
    %c0_134 = arith.constant 0 : index
    %c0_135 = arith.constant 0 : index
    %c0_136 = arith.constant 0 : index
    %205 = vector.load %arg16[%c0_134, %c0_135, %c0_136] : memref<2x1x32xbf16, #tpu.memory_space<vmem>>, vector<1x1x32xbf16>
    %206 = vector.shape_cast %205 : vector<1x1x32xbf16> to vector<1x32xbf16>
    %cst_137 = arith.constant dense<0.000000e+00> : vector<8xf32>
    %207 = vector.multi_reduction <add>, %202, %cst_137 [1] : vector<8x32xf32> to vector<8xf32>
    %208 = vector.shape_cast %207 : vector<8xf32> to vector<8x1xf32>
    %cst_138 = arith.constant 3.200000e+01 : f32
    %209 = vector.broadcast %cst_138 : f32 to vector<8x1xf32>
    %210 = arith.divf %208, %209 : vector<8x1xf32>
    %211 = vector.broadcast %210 : vector<8x1xf32> to vector<8x32xf32>
    %212 = arith.subf %202, %211 : vector<8x32xf32>
    %213 = vector.broadcast %210 : vector<8x1xf32> to vector<8x32xf32>
    %214 = arith.subf %202, %213 : vector<8x32xf32>
    %215 = arith.mulf %212, %214 : vector<8x32xf32>
    %cst_139 = arith.constant dense<0.000000e+00> : vector<8xf32>
    %216 = vector.multi_reduction <add>, %215, %cst_139 [1] : vector<8x32xf32> to vector<8xf32>
    %217 = vector.shape_cast %216 : vector<8xf32> to vector<8x1xf32>
    %cst_140 = arith.constant 3.200000e+01 : f32
    %218 = vector.broadcast %cst_140 : f32 to vector<8x1xf32>
    %219 = arith.divf %217, %218 : vector<8x1xf32>
    %220 = vector.broadcast %210 : vector<8x1xf32> to vector<8x32xf32>
    %221 = arith.subf %202, %220 : vector<8x32xf32>
    %cst_141 = arith.constant 9.99999974E-6 : f32
    %222 = vector.broadcast %cst_141 : f32 to vector<8x1xf32>
    %223 = arith.addf %219, %222 : vector<8x1xf32>
    %224 = math.rsqrt %223 : vector<8x1xf32>
    %225 = vector.broadcast %224 : vector<8x1xf32> to vector<8x32xf32>
    %226 = arith.mulf %221, %225 : vector<8x32xf32>
    %227 = arith.extf %204 : vector<1x32xbf16> to vector<1x32xf32>
    %228 = vector.broadcast %227 : vector<1x32xf32> to vector<8x32xf32>
    %229 = arith.mulf %226, %228 : vector<8x32xf32>
    %230 = arith.extf %206 : vector<1x32xbf16> to vector<1x32xf32>
    %231 = vector.broadcast %230 : vector<1x32xf32> to vector<8x32xf32>
    %232 = arith.addf %229, %231 : vector<8x32xf32>
    %233 = arith.truncf %232 : vector<8x32xf32> to vector<8x32xbf16>
    %c1_142 = arith.constant 1 : index
    %c0_143 = arith.constant 0 : index
    %c0_144 = arith.constant 0 : index
    %c0_145 = arith.constant 0 : index
    %c0_146 = arith.constant 0 : index
    %234 = vector.load %arg5[%c1_142, %c0_143, %c0_144, %c0_145, %c0_146] : memref<2x3x2x32x16xbf16, #tpu.memory_space<vmem>>, vector<1x1x1x32x16xbf16>
    %235 = vector.shape_cast %234 : vector<1x1x1x32x16xbf16> to vector<32x16xbf16>
    %cst_147 = arith.constant dense<0.000000e+00> : vector<8x16xf32>
    %236 = tpu.matmul %233, %235, %cst_147 {dimension_numbers = #tpu.dot_dimension_numbers<[1], [0], [0], [1], [0, 0, 1, 1], [], []>} : vector<8x32xbf16>, vector<32x16xbf16>, vector<8x16xf32> -> vector<8x16xf32>
    %c1_148 = arith.constant 1 : index
    %c0_149 = arith.constant 0 : index
    %c0_150 = arith.constant 0 : index
    %c0_151 = arith.constant 0 : index
    %c0_152 = arith.constant 0 : index
    %237 = vector.load %arg6[%c1_148, %c0_149, %c0_150, %c0_151, %c0_152] : memref<2x3x2x1x16xbf16, #tpu.memory_space<vmem>>, vector<1x1x1x1x16xbf16>
    %238 = vector.shape_cast %237 : vector<1x1x1x1x16xbf16> to vector<1x16xbf16>
    %239 = arith.extf %238 : vector<1x16xbf16> to vector<1x16xf32>
    %240 = vector.broadcast %239 : vector<1x16xf32> to vector<8x16xf32>
    %241 = arith.addf %236, %240 : vector<8x16xf32>
    %c1_153 = arith.constant 1 : index
    %c1_154 = arith.constant 1 : index
    %c0_155 = arith.constant 0 : index
    %c0_156 = arith.constant 0 : index
    %c0_157 = arith.constant 0 : index
    %242 = vector.load %arg5[%c1_153, %c1_154, %c0_155, %c0_156, %c0_157] : memref<2x3x2x32x16xbf16, #tpu.memory_space<vmem>>, vector<1x1x1x32x16xbf16>
    %243 = vector.shape_cast %242 : vector<1x1x1x32x16xbf16> to vector<32x16xbf16>
    %cst_158 = arith.constant dense<0.000000e+00> : vector<8x16xf32>
    %244 = tpu.matmul %233, %243, %cst_158 {dimension_numbers = #tpu.dot_dimension_numbers<[1], [0], [0], [1], [0, 0, 1, 1], [], []>} : vector<8x32xbf16>, vector<32x16xbf16>, vector<8x16xf32> -> vector<8x16xf32>
    %c1_159 = arith.constant 1 : index
    %c1_160 = arith.constant 1 : index
    %c0_161 = arith.constant 0 : index
    %c0_162 = arith.constant 0 : index
    %c0_163 = arith.constant 0 : index
    %245 = vector.load %arg6[%c1_159, %c1_160, %c0_161, %c0_162, %c0_163] : memref<2x3x2x1x16xbf16, #tpu.memory_space<vmem>>, vector<1x1x1x1x16xbf16>
    %246 = vector.shape_cast %245 : vector<1x1x1x1x16xbf16> to vector<1x16xbf16>
    %247 = arith.extf %246 : vector<1x16xbf16> to vector<1x16xf32>
    %248 = vector.broadcast %247 : vector<1x16xf32> to vector<8x16xf32>
    %249 = arith.addf %244, %248 : vector<8x16xf32>
    %c1_164 = arith.constant 1 : index
    %c2_165 = arith.constant 2 : index
    %c0_166 = arith.constant 0 : index
    %c0_167 = arith.constant 0 : index
    %c0_168 = arith.constant 0 : index
    %250 = vector.load %arg5[%c1_164, %c2_165, %c0_166, %c0_167, %c0_168] : memref<2x3x2x32x16xbf16, #tpu.memory_space<vmem>>, vector<1x1x1x32x16xbf16>
    %251 = vector.shape_cast %250 : vector<1x1x1x32x16xbf16> to vector<32x16xbf16>
    %cst_169 = arith.constant dense<0.000000e+00> : vector<8x16xf32>
    %252 = tpu.matmul %233, %251, %cst_169 {dimension_numbers = #tpu.dot_dimension_numbers<[1], [0], [0], [1], [0, 0, 1, 1], [], []>} : vector<8x32xbf16>, vector<32x16xbf16>, vector<8x16xf32> -> vector<8x16xf32>
    %c1_170 = arith.constant 1 : index
    %c2_171 = arith.constant 2 : index
    %c0_172 = arith.constant 0 : index
    %c0_173 = arith.constant 0 : index
    %c0_174 = arith.constant 0 : index
    %253 = vector.load %arg6[%c1_170, %c2_171, %c0_172, %c0_173, %c0_174] : memref<2x3x2x1x16xbf16, #tpu.memory_space<vmem>>, vector<1x1x1x1x16xbf16>
    %254 = vector.shape_cast %253 : vector<1x1x1x1x16xbf16> to vector<1x16xbf16>
    %255 = arith.extf %254 : vector<1x16xbf16> to vector<1x16xf32>
    %256 = vector.broadcast %255 : vector<1x16xf32> to vector<8x16xf32>
    %257 = arith.addf %252, %256 : vector<8x16xf32>
    %cst_175 = arith.constant 2.500000e-01 : f32
    %258 = vector.broadcast %cst_175 : f32 to vector<8x16xf32>
    %259 = arith.mulf %241, %258 : vector<8x16xf32>
    %260 = arith.truncf %259 : vector<8x16xf32> to vector<8x16xbf16>
    %261 = arith.truncf %249 : vector<8x16xf32> to vector<8x16xbf16>
    %262 = arith.truncf %257 : vector<8x16xf32> to vector<8x16xbf16>
    %cst_176 = arith.constant dense<0.000000e+00> : vector<8x8xf32>
    %263 = tpu.matmul %260, %261, %cst_176 {dimension_numbers = #tpu.dot_dimension_numbers<[1], [1], [0], [0], [0, 0, 1, 0], [], []>} : vector<8x16xbf16>, vector<8x16xbf16>, vector<8x8xf32> -> vector<8x8xf32>
    %264 = vector.broadcast %37 : vector<1x8xf32> to vector<8x8xf32>
    %265 = arith.addf %263, %264 : vector<8x8xf32>
    %cst_177 = arith.constant dense<0xFF800000> : vector<8xf32>
    %266 = vector.multi_reduction <maximumf>, %265, %cst_177 [1] : vector<8x8xf32> to vector<8xf32>
    %267 = vector.shape_cast %266 : vector<8xf32> to vector<8x1xf32>
    %268 = vector.broadcast %267 : vector<8x1xf32> to vector<8x8xf32>
    %269 = arith.subf %265, %268 : vector<8x8xf32>
    %270 = math.exp %269 : vector<8x8xf32>
    %cst_178 = arith.constant dense<0.000000e+00> : vector<8xf32>
    %271 = vector.multi_reduction <add>, %270, %cst_178 [1] : vector<8x8xf32> to vector<8xf32>
    %272 = vector.shape_cast %271 : vector<8xf32> to vector<8x1xf32>
    %273 = tpu.reciprocal %272 {approx = true} : vector<8x1xf32> -> vector<8x1xf32>
    %274 = vector.broadcast %273 : vector<8x1xf32> to vector<8x8xf32>
    %275 = arith.mulf %270, %274 : vector<8x8xf32>
    %276 = arith.truncf %275 : vector<8x8xf32> to vector<8x8xbf16>
    %cst_179 = arith.constant dense<0.000000e+00> : vector<8x16xf32>
    %277 = tpu.matmul %276, %262, %cst_179 {dimension_numbers = #tpu.dot_dimension_numbers<[1], [0], [0], [1], [0, 0, 1, 1], [], []>} : vector<8x8xbf16>, vector<8x16xbf16>, vector<8x16xf32> -> vector<8x16xf32>
    %278 = arith.truncf %277 : vector<8x16xf32> to vector<8x16xbf16>
    %c1_180 = arith.constant 1 : index
    %c0_181 = arith.constant 0 : index
    %c0_182 = arith.constant 0 : index
    %c0_183 = arith.constant 0 : index
    %279 = vector.load %arg7[%c1_180, %c0_181, %c0_182, %c0_183] : memref<2x2x16x32xbf16, #tpu.memory_space<vmem>>, vector<1x1x16x32xbf16>
    %280 = vector.shape_cast %279 : vector<1x1x16x32xbf16> to vector<16x32xbf16>
    %cst_184 = arith.constant dense<0.000000e+00> : vector<8x32xf32>
    %281 = tpu.matmul %278, %280, %cst_184 {dimension_numbers = #tpu.dot_dimension_numbers<[1], [0], [0], [1], [0, 0, 1, 1], [], []>} : vector<8x16xbf16>, vector<16x32xbf16>, vector<8x32xf32> -> vector<8x32xf32>
    %c1_185 = arith.constant 1 : index
    %c0_186 = arith.constant 0 : index
    %c1_187 = arith.constant 1 : index
    %c0_188 = arith.constant 0 : index
    %c0_189 = arith.constant 0 : index
    %282 = vector.load %arg5[%c1_185, %c0_186, %c1_187, %c0_188, %c0_189] : memref<2x3x2x32x16xbf16, #tpu.memory_space<vmem>>, vector<1x1x1x32x16xbf16>
    %283 = vector.shape_cast %282 : vector<1x1x1x32x16xbf16> to vector<32x16xbf16>
    %cst_190 = arith.constant dense<0.000000e+00> : vector<8x16xf32>
    %284 = tpu.matmul %233, %283, %cst_190 {dimension_numbers = #tpu.dot_dimension_numbers<[1], [0], [0], [1], [0, 0, 1, 1], [], []>} : vector<8x32xbf16>, vector<32x16xbf16>, vector<8x16xf32> -> vector<8x16xf32>
    %c1_191 = arith.constant 1 : index
    %c0_192 = arith.constant 0 : index
    %c1_193 = arith.constant 1 : index
    %c0_194 = arith.constant 0 : index
    %c0_195 = arith.constant 0 : index
    %285 = vector.load %arg6[%c1_191, %c0_192, %c1_193, %c0_194, %c0_195] : memref<2x3x2x1x16xbf16, #tpu.memory_space<vmem>>, vector<1x1x1x1x16xbf16>
    %286 = vector.shape_cast %285 : vector<1x1x1x1x16xbf16> to vector<1x16xbf16>
    %287 = arith.extf %286 : vector<1x16xbf16> to vector<1x16xf32>
    %288 = vector.broadcast %287 : vector<1x16xf32> to vector<8x16xf32>
    %289 = arith.addf %284, %288 : vector<8x16xf32>
    %c1_196 = arith.constant 1 : index
    %c1_197 = arith.constant 1 : index
    %c1_198 = arith.constant 1 : index
    %c0_199 = arith.constant 0 : index
    %c0_200 = arith.constant 0 : index
    %290 = vector.load %arg5[%c1_196, %c1_197, %c1_198, %c0_199, %c0_200] : memref<2x3x2x32x16xbf16, #tpu.memory_space<vmem>>, vector<1x1x1x32x16xbf16>
    %291 = vector.shape_cast %290 : vector<1x1x1x32x16xbf16> to vector<32x16xbf16>
    %cst_201 = arith.constant dense<0.000000e+00> : vector<8x16xf32>
    %292 = tpu.matmul %233, %291, %cst_201 {dimension_numbers = #tpu.dot_dimension_numbers<[1], [0], [0], [1], [0, 0, 1, 1], [], []>} : vector<8x32xbf16>, vector<32x16xbf16>, vector<8x16xf32> -> vector<8x16xf32>
    %c1_202 = arith.constant 1 : index
    %c1_203 = arith.constant 1 : index
    %c1_204 = arith.constant 1 : index
    %c0_205 = arith.constant 0 : index
    %c0_206 = arith.constant 0 : index
    %293 = vector.load %arg6[%c1_202, %c1_203, %c1_204, %c0_205, %c0_206] : memref<2x3x2x1x16xbf16, #tpu.memory_space<vmem>>, vector<1x1x1x1x16xbf16>
    %294 = vector.shape_cast %293 : vector<1x1x1x1x16xbf16> to vector<1x16xbf16>
    %295 = arith.extf %294 : vector<1x16xbf16> to vector<1x16xf32>
    %296 = vector.broadcast %295 : vector<1x16xf32> to vector<8x16xf32>
    %297 = arith.addf %292, %296 : vector<8x16xf32>
    %c1_207 = arith.constant 1 : index
    %c2_208 = arith.constant 2 : index
    %c1_209 = arith.constant 1 : index
    %c0_210 = arith.constant 0 : index
    %c0_211 = arith.constant 0 : index
    %298 = vector.load %arg5[%c1_207, %c2_208, %c1_209, %c0_210, %c0_211] : memref<2x3x2x32x16xbf16, #tpu.memory_space<vmem>>, vector<1x1x1x32x16xbf16>
    %299 = vector.shape_cast %298 : vector<1x1x1x32x16xbf16> to vector<32x16xbf16>
    %cst_212 = arith.constant dense<0.000000e+00> : vector<8x16xf32>
    %300 = tpu.matmul %233, %299, %cst_212 {dimension_numbers = #tpu.dot_dimension_numbers<[1], [0], [0], [1], [0, 0, 1, 1], [], []>} : vector<8x32xbf16>, vector<32x16xbf16>, vector<8x16xf32> -> vector<8x16xf32>
    %c1_213 = arith.constant 1 : index
    %c2_214 = arith.constant 2 : index
    %c1_215 = arith.constant 1 : index
    %c0_216 = arith.constant 0 : index
    %c0_217 = arith.constant 0 : index
    %301 = vector.load %arg6[%c1_213, %c2_214, %c1_215, %c0_216, %c0_217] : memref<2x3x2x1x16xbf16, #tpu.memory_space<vmem>>, vector<1x1x1x1x16xbf16>
    %302 = vector.shape_cast %301 : vector<1x1x1x1x16xbf16> to vector<1x16xbf16>
    %303 = arith.extf %302 : vector<1x16xbf16> to vector<1x16xf32>
    %304 = vector.broadcast %303 : vector<1x16xf32> to vector<8x16xf32>
    %305 = arith.addf %300, %304 : vector<8x16xf32>
    %cst_218 = arith.constant 2.500000e-01 : f32
    %306 = vector.broadcast %cst_218 : f32 to vector<8x16xf32>
    %307 = arith.mulf %289, %306 : vector<8x16xf32>
    %308 = arith.truncf %307 : vector<8x16xf32> to vector<8x16xbf16>
    %309 = arith.truncf %297 : vector<8x16xf32> to vector<8x16xbf16>
    %310 = arith.truncf %305 : vector<8x16xf32> to vector<8x16xbf16>
    %cst_219 = arith.constant dense<0.000000e+00> : vector<8x8xf32>
    %311 = tpu.matmul %308, %309, %cst_219 {dimension_numbers = #tpu.dot_dimension_numbers<[1], [1], [0], [0], [0, 0, 1, 0], [], []>} : vector<8x16xbf16>, vector<8x16xbf16>, vector<8x8xf32> -> vector<8x8xf32>
    %312 = vector.broadcast %37 : vector<1x8xf32> to vector<8x8xf32>
    %313 = arith.addf %311, %312 : vector<8x8xf32>
    %cst_220 = arith.constant dense<0xFF800000> : vector<8xf32>
    %314 = vector.multi_reduction <maximumf>, %313, %cst_220 [1] : vector<8x8xf32> to vector<8xf32>
    %315 = vector.shape_cast %314 : vector<8xf32> to vector<8x1xf32>
    %316 = vector.broadcast %315 : vector<8x1xf32> to vector<8x8xf32>
    %317 = arith.subf %313, %316 : vector<8x8xf32>
    %318 = math.exp %317 : vector<8x8xf32>
    %cst_221 = arith.constant dense<0.000000e+00> : vector<8xf32>
    %319 = vector.multi_reduction <add>, %318, %cst_221 [1] : vector<8x8xf32> to vector<8xf32>
    %320 = vector.shape_cast %319 : vector<8xf32> to vector<8x1xf32>
    %321 = tpu.reciprocal %320 {approx = true} : vector<8x1xf32> -> vector<8x1xf32>
    %322 = vector.broadcast %321 : vector<8x1xf32> to vector<8x8xf32>
    %323 = arith.mulf %318, %322 : vector<8x8xf32>
    %324 = arith.truncf %323 : vector<8x8xf32> to vector<8x8xbf16>
    %cst_222 = arith.constant dense<0.000000e+00> : vector<8x16xf32>
    %325 = tpu.matmul %324, %310, %cst_222 {dimension_numbers = #tpu.dot_dimension_numbers<[1], [0], [0], [1], [0, 0, 1, 1], [], []>} : vector<8x8xbf16>, vector<8x16xbf16>, vector<8x16xf32> -> vector<8x16xf32>
    %326 = arith.truncf %325 : vector<8x16xf32> to vector<8x16xbf16>
    %c1_223 = arith.constant 1 : index
    %c1_224 = arith.constant 1 : index
    %c0_225 = arith.constant 0 : index
    %c0_226 = arith.constant 0 : index
    %327 = vector.load %arg7[%c1_223, %c1_224, %c0_225, %c0_226] : memref<2x2x16x32xbf16, #tpu.memory_space<vmem>>, vector<1x1x16x32xbf16>
    %328 = vector.shape_cast %327 : vector<1x1x16x32xbf16> to vector<16x32xbf16>
    %cst_227 = arith.constant dense<0.000000e+00> : vector<8x32xf32>
    %329 = tpu.matmul %326, %328, %cst_227 {dimension_numbers = #tpu.dot_dimension_numbers<[1], [0], [0], [1], [0, 0, 1, 1], [], []>} : vector<8x16xbf16>, vector<16x32xbf16>, vector<8x32xf32> -> vector<8x32xf32>
    %330 = arith.addf %281, %329 : vector<8x32xf32>
    %c1_228 = arith.constant 1 : index
    %c0_229 = arith.constant 0 : index
    %c0_230 = arith.constant 0 : index
    %331 = vector.load %arg8[%c1_228, %c0_229, %c0_230] : memref<2x1x32xbf16, #tpu.memory_space<vmem>>, vector<1x1x32xbf16>
    %332 = vector.shape_cast %331 : vector<1x1x32xbf16> to vector<1x32xbf16>
    %333 = arith.extf %332 : vector<1x32xbf16> to vector<1x32xf32>
    %334 = vector.broadcast %333 : vector<1x32xf32> to vector<8x32xf32>
    %335 = arith.addf %330, %334 : vector<8x32xf32>
    %336 = arith.addf %335, %232 : vector<8x32xf32>
    %c1_231 = arith.constant 1 : index
    %c0_232 = arith.constant 0 : index
    %c0_233 = arith.constant 0 : index
    %337 = vector.load %arg9[%c1_231, %c0_232, %c0_233] : memref<2x1x32xbf16, #tpu.memory_space<vmem>>, vector<1x1x32xbf16>
    %338 = vector.shape_cast %337 : vector<1x1x32xbf16> to vector<1x32xbf16>
    %c1_234 = arith.constant 1 : index
    %c0_235 = arith.constant 0 : index
    %c0_236 = arith.constant 0 : index
    %339 = vector.load %arg10[%c1_234, %c0_235, %c0_236] : memref<2x1x32xbf16, #tpu.memory_space<vmem>>, vector<1x1x32xbf16>
    %340 = vector.shape_cast %339 : vector<1x1x32xbf16> to vector<1x32xbf16>
    %cst_237 = arith.constant dense<0.000000e+00> : vector<8xf32>
    %341 = vector.multi_reduction <add>, %336, %cst_237 [1] : vector<8x32xf32> to vector<8xf32>
    %342 = vector.shape_cast %341 : vector<8xf32> to vector<8x1xf32>
    %cst_238 = arith.constant 3.200000e+01 : f32
    %343 = vector.broadcast %cst_238 : f32 to vector<8x1xf32>
    %344 = arith.divf %342, %343 : vector<8x1xf32>
    %345 = vector.broadcast %344 : vector<8x1xf32> to vector<8x32xf32>
    %346 = arith.subf %336, %345 : vector<8x32xf32>
    %347 = vector.broadcast %344 : vector<8x1xf32> to vector<8x32xf32>
    %348 = arith.subf %336, %347 : vector<8x32xf32>
    %349 = arith.mulf %346, %348 : vector<8x32xf32>
    %cst_239 = arith.constant dense<0.000000e+00> : vector<8xf32>
    %350 = vector.multi_reduction <add>, %349, %cst_239 [1] : vector<8x32xf32> to vector<8xf32>
    %351 = vector.shape_cast %350 : vector<8xf32> to vector<8x1xf32>
    %cst_240 = arith.constant 3.200000e+01 : f32
    %352 = vector.broadcast %cst_240 : f32 to vector<8x1xf32>
    %353 = arith.divf %351, %352 : vector<8x1xf32>
    %354 = vector.broadcast %344 : vector<8x1xf32> to vector<8x32xf32>
    %355 = arith.subf %336, %354 : vector<8x32xf32>
    %cst_241 = arith.constant 9.99999974E-6 : f32
    %356 = vector.broadcast %cst_241 : f32 to vector<8x1xf32>
    %357 = arith.addf %353, %356 : vector<8x1xf32>
    %358 = math.rsqrt %357 : vector<8x1xf32>
    %359 = vector.broadcast %358 : vector<8x1xf32> to vector<8x32xf32>
    %360 = arith.mulf %355, %359 : vector<8x32xf32>
    %361 = arith.extf %338 : vector<1x32xbf16> to vector<1x32xf32>
    %362 = vector.broadcast %361 : vector<1x32xf32> to vector<8x32xf32>
    %363 = arith.mulf %360, %362 : vector<8x32xf32>
    %364 = arith.extf %340 : vector<1x32xbf16> to vector<1x32xf32>
    %365 = vector.broadcast %364 : vector<1x32xf32> to vector<8x32xf32>
    %366 = arith.addf %363, %365 : vector<8x32xf32>
    %367 = arith.truncf %366 : vector<8x32xf32> to vector<8x32xbf16>
    %c1_242 = arith.constant 1 : index
    %c0_243 = arith.constant 0 : index
    %c0_244 = arith.constant 0 : index
    %368 = vector.load %arg11[%c1_242, %c0_243, %c0_244] : memref<2x32x64xbf16, #tpu.memory_space<vmem>>, vector<1x32x64xbf16>
    %369 = vector.shape_cast %368 : vector<1x32x64xbf16> to vector<32x64xbf16>
    %cst_245 = arith.constant dense<0.000000e+00> : vector<8x64xf32>
    %370 = tpu.matmul %367, %369, %cst_245 {dimension_numbers = #tpu.dot_dimension_numbers<[1], [0], [0], [1], [0, 0, 1, 1], [], []>} : vector<8x32xbf16>, vector<32x64xbf16>, vector<8x64xf32> -> vector<8x64xf32>
    %c1_246 = arith.constant 1 : index
    %c0_247 = arith.constant 0 : index
    %c0_248 = arith.constant 0 : index
    %371 = vector.load %arg12[%c1_246, %c0_247, %c0_248] : memref<2x1x64xbf16, #tpu.memory_space<vmem>>, vector<1x1x64xbf16>
    %372 = vector.shape_cast %371 : vector<1x1x64xbf16> to vector<1x64xbf16>
    %373 = arith.extf %372 : vector<1x64xbf16> to vector<1x64xf32>
    %374 = vector.broadcast %373 : vector<1x64xf32> to vector<8x64xf32>
    %375 = arith.addf %370, %374 : vector<8x64xf32>
    %376 = arith.mulf %375, %375 : vector<8x64xf32>
    %377 = arith.mulf %375, %376 : vector<8x64xf32>
    %cst_249 = arith.constant 4.471500e-02 : f32
    %378 = vector.broadcast %cst_249 : f32 to vector<8x64xf32>
    %379 = arith.mulf %378, %377 : vector<8x64xf32>
    %380 = arith.addf %375, %379 : vector<8x64xf32>
    %cst_250 = arith.constant 0.797884583 : f32
    %381 = vector.broadcast %cst_250 : f32 to vector<8x64xf32>
    %382 = arith.mulf %381, %380 : vector<8x64xf32>
    %383 = math.tanh %382 : vector<8x64xf32>
    %cst_251 = arith.constant 1.000000e+00 : f32
    %384 = vector.broadcast %cst_251 : f32 to vector<8x64xf32>
    %385 = arith.addf %384, %383 : vector<8x64xf32>
    %cst_252 = arith.constant 5.000000e-01 : f32
    %386 = vector.broadcast %cst_252 : f32 to vector<8x64xf32>
    %387 = arith.mulf %386, %385 : vector<8x64xf32>
    %388 = arith.mulf %375, %387 : vector<8x64xf32>
    %389 = arith.truncf %388 : vector<8x64xf32> to vector<8x64xbf16>
    %c1_253 = arith.constant 1 : index
    %c0_254 = arith.constant 0 : index
    %c0_255 = arith.constant 0 : index
    %390 = vector.load %arg13[%c1_253, %c0_254, %c0_255] : memref<2x64x32xbf16, #tpu.memory_space<vmem>>, vector<1x64x32xbf16>
    %391 = vector.shape_cast %390 : vector<1x64x32xbf16> to vector<64x32xbf16>
    %cst_256 = arith.constant dense<0.000000e+00> : vector<8x32xf32>
    %392 = tpu.matmul %389, %391, %cst_256 {dimension_numbers = #tpu.dot_dimension_numbers<[1], [0], [0], [1], [0, 0, 1, 1], [], []>} : vector<8x64xbf16>, vector<64x32xbf16>, vector<8x32xf32> -> vector<8x32xf32>
    %c1_257 = arith.constant 1 : index
    %c0_258 = arith.constant 0 : index
    %c0_259 = arith.constant 0 : index
    %393 = vector.load %arg14[%c1_257, %c0_258, %c0_259] : memref<2x1x32xbf16, #tpu.memory_space<vmem>>, vector<1x1x32xbf16>
    %394 = vector.shape_cast %393 : vector<1x1x32xbf16> to vector<1x32xbf16>
    %395 = arith.extf %394 : vector<1x32xbf16> to vector<1x32xf32>
    %396 = vector.broadcast %395 : vector<1x32xf32> to vector<8x32xf32>
    %397 = arith.addf %392, %396 : vector<8x32xf32>
    %398 = arith.addf %397, %366 : vector<8x32xf32>
    %c1_260 = arith.constant 1 : index
    %c0_261 = arith.constant 0 : index
    %c0_262 = arith.constant 0 : index
    %399 = vector.load %arg15[%c1_260, %c0_261, %c0_262] : memref<2x1x32xbf16, #tpu.memory_space<vmem>>, vector<1x1x32xbf16>
    %400 = vector.shape_cast %399 : vector<1x1x32xbf16> to vector<1x32xbf16>
    %c1_263 = arith.constant 1 : index
    %c0_264 = arith.constant 0 : index
    %c0_265 = arith.constant 0 : index
    %401 = vector.load %arg16[%c1_263, %c0_264, %c0_265] : memref<2x1x32xbf16, #tpu.memory_space<vmem>>, vector<1x1x32xbf16>
    %402 = vector.shape_cast %401 : vector<1x1x32xbf16> to vector<1x32xbf16>
    %cst_266 = arith.constant dense<0.000000e+00> : vector<8xf32>
    %403 = vector.multi_reduction <add>, %398, %cst_266 [1] : vector<8x32xf32> to vector<8xf32>
    %404 = vector.shape_cast %403 : vector<8xf32> to vector<8x1xf32>
    %cst_267 = arith.constant 3.200000e+01 : f32
    %405 = vector.broadcast %cst_267 : f32 to vector<8x1xf32>
    %406 = arith.divf %404, %405 : vector<8x1xf32>
    %407 = vector.broadcast %406 : vector<8x1xf32> to vector<8x32xf32>
    %408 = arith.subf %398, %407 : vector<8x32xf32>
    %409 = vector.broadcast %406 : vector<8x1xf32> to vector<8x32xf32>
    %410 = arith.subf %398, %409 : vector<8x32xf32>
    %411 = arith.mulf %408, %410 : vector<8x32xf32>
    %cst_268 = arith.constant dense<0.000000e+00> : vector<8xf32>
    %412 = vector.multi_reduction <add>, %411, %cst_268 [1] : vector<8x32xf32> to vector<8xf32>
    %413 = vector.shape_cast %412 : vector<8xf32> to vector<8x1xf32>
    %cst_269 = arith.constant 3.200000e+01 : f32
    %414 = vector.broadcast %cst_269 : f32 to vector<8x1xf32>
    %415 = arith.divf %413, %414 : vector<8x1xf32>
    %416 = vector.broadcast %406 : vector<8x1xf32> to vector<8x32xf32>
    %417 = arith.subf %398, %416 : vector<8x32xf32>
    %cst_270 = arith.constant 9.99999974E-6 : f32
    %418 = vector.broadcast %cst_270 : f32 to vector<8x1xf32>
    %419 = arith.addf %415, %418 : vector<8x1xf32>
    %420 = math.rsqrt %419 : vector<8x1xf32>
    %421 = vector.broadcast %420 : vector<8x1xf32> to vector<8x32xf32>
    %422 = arith.mulf %417, %421 : vector<8x32xf32>
    %423 = arith.extf %400 : vector<1x32xbf16> to vector<1x32xf32>
    %424 = vector.broadcast %423 : vector<1x32xf32> to vector<8x32xf32>
    %425 = arith.mulf %422, %424 : vector<8x32xf32>
    %426 = arith.extf %402 : vector<1x32xbf16> to vector<1x32xf32>
    %427 = vector.broadcast %426 : vector<1x32xf32> to vector<8x32xf32>
    %428 = arith.addf %425, %427 : vector<8x32xf32>
    %429 = arith.truncf %428 : vector<8x32xf32> to vector<8x32xbf16>
    %430 = vector.extract_strided_slice %429 {offsets = [0, 0], sizes = [1, 32], strides = [1, 1]} : vector<8x32xbf16> to vector<1x32xbf16>
    %c0_271 = arith.constant 0 : index
    %c0_272 = arith.constant 0 : index
    %431 = vector.load %arg17[%c0_271, %c0_272] : memref<32x32xbf16, #tpu.memory_space<vmem>>, vector<32x32xbf16>
    %cst_273 = arith.constant dense<0.000000e+00> : vector<1x32xf32>
    %432 = tpu.matmul %430, %431, %cst_273 {dimension_numbers = #tpu.dot_dimension_numbers<[1], [0], [0], [1], [0, 0, 1, 1], [], []>} : vector<1x32xbf16>, vector<32x32xbf16>, vector<1x32xf32> -> vector<1x32xf32>
    %c0_274 = arith.constant 0 : index
    %c0_275 = arith.constant 0 : index
    %433 = vector.load %arg18[%c0_274, %c0_275] : memref<1x32xbf16, #tpu.memory_space<vmem>>, vector<1x32xbf16>
    %434 = arith.extf %433 : vector<1x32xbf16> to vector<1x32xf32>
    %435 = arith.addf %432, %434 : vector<1x32xf32>
    %436 = math.tanh %435 : vector<1x32xf32>
    %437 = arith.truncf %436 : vector<1x32xf32> to vector<1x32xbf16>
    %c0_276 = arith.constant 0 : index
    %c0_277 = arith.constant 0 : index
    %438 = vector.load %arg19[%c0_276, %c0_277] : memref<32x128xbf16, #tpu.memory_space<vmem>>, vector<32x128xbf16>
    %cst_278 = arith.constant dense<0.000000e+00> : vector<1x128xf32>
    %439 = tpu.matmul %437, %438, %cst_278 {dimension_numbers = #tpu.dot_dimension_numbers<[1], [0], [0], [1], [0, 0, 1, 1], [], []>} : vector<1x32xbf16>, vector<32x128xbf16>, vector<1x128xf32> -> vector<1x128xf32>
    %c0_279 = arith.constant 0 : index
    %c0_280 = arith.constant 0 : index
    %440 = vector.load %arg20[%c0_279, %c0_280] : memref<1x128xbf16, #tpu.memory_space<vmem>>, vector<1x128xbf16>
    %441 = arith.extf %440 : vector<1x128xbf16> to vector<1x128xf32>
    %442 = arith.addf %439, %441 : vector<1x128xf32>
    %443 = arith.truncf %442 : vector<1x128xf32> to vector<1x128xbf16>
    %c0_281 = arith.constant 0 : index
    %c0_282 = arith.constant 0 : index
    %c0_283 = arith.constant 0 : index
    %444 = vector.load %arg21[%c0_281, %c0_282, %c0_283] : memref<1x1x128xbf16, #tpu.memory_space<vmem>>, vector<1x1x128xbf16>
    %445 = vector.shape_cast %444 : vector<1x1x128xbf16> to vector<1x128xbf16>
    %446 = vector.shape_cast %443 : vector<1x128xbf16> to vector<1x1x128xbf16>
    tpu.vector_store %arg21[%c0_281, %c0_282, %c0_283], %446 {strides = array<i32>} : memref<1x1x128xbf16, #tpu.memory_space<vmem>>, vector<1x1x128xbf16>,
    return
  }
  func.func @transform_0(%arg0: i32) -> (i32, i32, i32) {
    %c0_i32 = arith.constant 0 : i32
    %c0_i32_0 = arith.constant 0 : i32
    %c0_i32_1 = arith.constant 0 : i32
    return %arg0, %c0_i32, %c0_i32_0 : i32, i32, i32
  }
  func.func @transform_1(%arg0: i32) -> (i32, i32, i32) {
    %c0_i32 = arith.constant 0 : i32
    %c0_i32_0 = arith.constant 0 : i32
    %c0_i32_1 = arith.constant 0 : i32
    return %arg0, %c0_i32, %c0_i32_0 : i32, i32, i32
  }
  func.func @transform_2(%arg0: i32) -> (i32, i32) {
    %c0_i32 = arith.constant 0 : i32
    %c0_i32_0 = arith.constant 0 : i32
    %c0_i32_1 = arith.constant 0 : i32
    return %c0_i32, %c0_i32_0 : i32, i32
  }
  func.func @transform_3(%arg0: i32) -> (i32, i32) {
    %c0_i32 = arith.constant 0 : i32
    %c0_i32_0 = arith.constant 0 : i32
    %c0_i32_1 = arith.constant 0 : i32
    return %c0_i32, %c0_i32_0 : i32, i32
  }
  func.func @transform_4(%arg0: i32) -> (i32, i32, i32, i32, i32) {
    %c0_i32 = arith.constant 0 : i32
    %c0_i32_0 = arith.constant 0 : i32
    %c0_i32_1 = arith.constant 0 : i32
    %c0_i32_2 = arith.constant 0 : i32
    %c0_i32_3 = arith.constant 0 : i32
    %c0_i32_4 = arith.constant 0 : i32
    return %c0_i32, %c0_i32_0, %c0_i32_1, %c0_i32_2, %c0_i32_3 : i32, i32, i32, i32, i32
  }
  func.func @transform_5(%arg0: i32) -> (i32, i32, i32, i32, i32) {
    %c0_i32 = arith.constant 0 : i32
    %c0_i32_0 = arith.constant 0 : i32
    %c0_i32_1 = arith.constant 0 : i32
    %c0_i32_2 = arith.constant 0 : i32
    %c0_i32_3 = arith.constant 0 : i32
    %c0_i32_4 = arith.constant 0 : i32
    return %c0_i32, %c0_i32_0, %c0_i32_1, %c0_i32_2, %c0_i32_3 : i32, i32, i32, i32, i32
  }
  func.func @transform_6(%arg0: i32) -> (i32, i32, i32, i32) {
    %c0_i32 = arith.constant 0 : i32
    %c0_i32_0 = arith.constant 0 : i32
    %c0_i32_1 = arith.constant 0 : i32
    %c0_i32_2 = arith.constant 0 : i32
    %c0_i32_3 = arith.constant 0 : i32
    return %c0_i32, %c0_i32_0, %c0_i32_1, %c0_i32_2 : i32, i32, i32, i32
  }
  func.func @transform_7(%arg0: i32) -> (i32, i32, i32) {
    %c0_i32 = arith.constant 0 : i32
    %c0_i32_0 = arith.constant 0 : i32
    %c0_i32_1 = arith.constant 0 : i32
    %c0_i32_2 = arith.constant 0 : i32
    return %c0_i32, %c0_i32_0, %c0_i32_1 : i32, i32, i32
  }
  func.func @transform_8(%arg0: i32) -> (i32, i32, i32) {
    %c0_i32 = arith.constant 0 : i32
    %c0_i32_0 = arith.constant 0 : i32
    %c0_i32_1 = arith.constant 0 : i32
    %c0_i32_2 = arith.constant 0 : i32
    return %c0_i32, %c0_i32_0, %c0_i32_1 : i32, i32, i32
  }
  func.func @transform_9(%arg0: i32) -> (i32, i32, i32) {
    %c0_i32 = arith.constant 0 : i32
    %c0_i32_0 = arith.constant 0 : i32
    %c0_i32_1 = arith.constant 0 : i32
    %c0_i32_2 = arith.constant 0 : i32
    return %c0_i32, %c0_i32_0, %c0_i32_1 : i32, i32, i32
  }
  func.func @transform_10(%arg0: i32) -> (i32, i32, i32) {
    %c0_i32 = arith.constant 0 : i32
    %c0_i32_0 = arith.constant 0 : i32
    %c0_i32_1 = arith.constant 0 : i32
    %c0_i32_2 = arith.constant 0 : i32
    return %c0_i32, %c0_i32_0, %c0_i32_1 : i32, i32, i32
  }
  func.func @transform_11(%arg0: i32) -> (i32, i32, i32) {
    %c0_i32 = arith.constant 0 : i32
    %c0_i32_0 = arith.constant 0 : i32
    %c0_i32_1 = arith.constant 0 : i32
    %c0_i32_2 = arith.constant 0 : i32
    return %c0_i32, %c0_i32_0, %c0_i32_1 : i32, i32, i32
  }
  func.func @transform_12(%arg0: i32) -> (i32, i32, i32) {
    %c0_i32 = arith.constant 0 : i32
    %c0_i32_0 = arith.constant 0 : i32
    %c0_i32_1 = arith.constant 0 : i32
    %c0_i32_2 = arith.constant 0 : i32
    return %c0_i32, %c0_i32_0, %c0_i32_1 : i32, i32, i32
  }
  func.func @transform_13(%arg0: i32) -> (i32, i32, i32) {
    %c0_i32 = arith.constant 0 : i32
    %c0_i32_0 = arith.constant 0 : i32
    %c0_i32_1 = arith.constant 0 : i32
    %c0_i32_2 = arith.constant 0 : i32
    return %c0_i32, %c0_i32_0, %c0_i32_1 : i32, i32, i32
  }
  func.func @transform_14(%arg0: i32) -> (i32, i32, i32) {
    %c0_i32 = arith.constant 0 : i32
    %c0_i32_0 = arith.constant 0 : i32
    %c0_i32_1 = arith.constant 0 : i32
    %c0_i32_2 = arith.constant 0 : i32
    return %c0_i32, %c0_i32_0, %c0_i32_1 : i32, i32, i32
  }
  func.func @transform_15(%arg0: i32) -> (i32, i32, i32) {
    %c0_i32 = arith.constant 0 : i32
    %c0_i32_0 = arith.constant 0 : i32
    %c0_i32_1 = arith.constant 0 : i32
    %c0_i32_2 = arith.constant 0 : i32
    return %c0_i32, %c0_i32_0, %c0_i32_1 : i32, i32, i32
  }
  func.func @transform_16(%arg0: i32) -> (i32, i32) {
    %c0_i32 = arith.constant 0 : i32
    %c0_i32_0 = arith.constant 0 : i32
    %c0_i32_1 = arith.constant 0 : i32
    return %c0_i32, %c0_i32_0 : i32, i32
  }
  func.func @transform_17(%arg0: i32) -> (i32, i32) {
    %c0_i32 = arith.constant 0 : i32
    %c0_i32_0 = arith.constant 0 : i32
    %c0_i32_1 = arith.constant 0 : i32
    return %c0_i32, %c0_i32_0 : i32, i32
  }
  func.func @transform_18(%arg0: i32) -> (i32, i32) {
    %c0_i32 = arith.constant 0 : i32
    %c0_i32_0 = arith.constant 0 : i32
    %c0_i32_1 = arith.constant 0 : i32
    return %c0_i32, %c0_i32_0 : i32, i32
  }
  func.func @transform_19(%arg0: i32) -> (i32, i32) {
    %c0_i32 = arith.constant 0 : i32
    %c0_i32_0 = arith.constant 0 : i32
    %c0_i32_1 = arith.constant 0 : i32
    return %c0_i32, %c0_i32_0 : i32, i32
  }
  func.func @transform_20(%arg0: i32) -> (i32, i32, i32) {
    %c0_i32 = arith.constant 0 : i32
    %c0_i32_0 = arith.constant 0 : i32
    %c0_i32_1 = arith.constant 0 : i32
    return %arg0, %c0_i32, %c0_i32_0 : i32, i32, i32
  }
}

</mosaic_0001>

<llo_original>
// kernel: _lambda_.1
$region0: #{_lambda_.1}
  #allocation0 [shape = 'u32[]', space=smem, size = 0x4, offset = 0x4, fixed_abs, tag = 'smem constant byte address 0x4 - core index']
  #allocation1 [shape = 'u32[72,128]{1,0:T(1,128)}', space=vmem, size = 0x9000, scoped, tag = 'internal scratch']
  %s0 = inlined_call_operand.vmem [shape: bf16[2,8,32], index: 0, kind: input, shape index: {}]
  %s1 = inlined_call_operand.vmem [shape: f32[2,1,8], index: 1, kind: input, shape index: {}]
  %s2 = inlined_call_operand.vmem [shape: bf16[1,32], index: 2, kind: input, shape index: {}]
  %s3 = inlined_call_operand.vmem [shape: bf16[1,32], index: 3, kind: input, shape index: {}]
  %s4 = inlined_call_operand.vmem [shape: bf16[2,3,2,32,16], index: 4, kind: input, shape index: {}]
  %s5 = inlined_call_operand.vmem [shape: bf16[2,3,2,1,16], index: 5, kind: input, shape index: {}]
  %s6 = inlined_call_operand.vmem [shape: bf16[2,2,16,32], index: 6, kind: input, shape index: {}]
  %s7 = inlined_call_operand.vmem [shape: bf16[2,1,32], index: 7, kind: input, shape index: {}]
  %s8 = inlined_call_operand.vmem [shape: bf16[2,1,32], index: 8, kind: input, shape index: {}]
  %s9 = inlined_call_operand.vmem [shape: bf16[2,1,32], index: 9, kind: input, shape index: {}]
  %s10 = inlined_call_operand.vmem [shape: bf16[2,32,64], index: 10, kind: input, shape index: {}]
  %s11 = inlined_call_operand.vmem [shape: bf16[2,1,64], index: 11, kind: input, shape index: {}]
  %s12 = inlined_call_operand.vmem [shape: bf16[2,64,32], index: 12, kind: input, shape index: {}]
  %s13 = inlined_call_operand.vmem [shape: bf16[2,1,32], index: 13, kind: input, shape index: {}]
  %s14 = inlined_call_operand.vmem [shape: bf16[2,1,32], index: 14, kind: input, shape index: {}]
  %s15 = inlined_call_operand.vmem [shape: bf16[2,1,32], index: 15, kind: input, shape index: {}]
  %s16 = inlined_call_operand.vmem [shape: bf16[32,32], index: 16, kind: input, shape index: {}]
  %s17 = inlined_call_operand.vmem [shape: bf16[1,32], index: 17, kind: input, shape index: {}]
  %s18 = inlined_call_operand.vmem [shape: bf16[32,128], index: 18, kind: input, shape index: {}]
  %s19 = inlined_call_operand.vmem [shape: bf16[1,128], index: 19, kind: input, shape index: {}]
  %s20 = inlined_call_operand.vmem [shape: bf16[2,1,128], index: 20, kind: output, shape index: {}]
  %s21 = sld [smem:[#allocation0]]
  $region113: #{_lambda_.1} parent=0
    _
  %s23 = ssub.s32 1, %s21
  %s24 = scalar_select 0, %s23, %s21
  loop: start=0, step=1, limit=4
  $region2: #{_lambda_.1} parent=0 // loop_pre_header
    _
  $region3: #{_lambda_.1} parent=0 // loop_header
    %s26 = sphi 0, %s30
    %p27 = scmp.ge.s32.totalorder %s26, 4
    %s36 = sphi 0, %s38
    %s39 = sphi 0, %s36
    %s40 = sphi 0, %s39
    %s56 = sphi 0, %s40
    %s62 = sphi 0, %s64
    %s65 = sphi 0, %s62
    %s66 = sphi 0, %s65
    %s82 = sphi 0, %s66
    %s86 = sphi 0, %s86
    %s88 = sphi 0, %s86
    %s89 = sphi 0, %s88
    %s103 = sphi 0, %s89
    %s107 = sphi 0, %s107
    %s109 = sphi 0, %s107
    %s110 = sphi 0, %s109
    %s124 = sphi 0, %s110
    %s128 = sphi 0, %s128
    %s130 = sphi 0, %s128
    %s131 = sphi 0, %s130
    %s145 = sphi 0, %s131
    %s149 = sphi 0, %s149
    %s151 = sphi 0, %s149
    %s152 = sphi 0, %s151
    %s166 = sphi 0, %s152
    %s170 = sphi 0, %s170
    %s172 = sphi 0, %s170
    %s173 = sphi 0, %s172
    %s187 = sphi 0, %s173
    %s191 = sphi 0, %s191
    %s193 = sphi 0, %s191
    %s194 = sphi 0, %s193
    %s208 = sphi 0, %s194
    %s212 = sphi 0, %s212
    %s214 = sphi 0, %s212
    %s215 = sphi 0, %s214
    %s229 = sphi 0, %s215
    %s233 = sphi 0, %s233
    %s235 = sphi 0, %s233
    %s236 = sphi 0, %s235
    %s250 = sphi 0, %s236
    %s254 = sphi 0, %s254
    %s256 = sphi 0, %s254
    %s257 = sphi 0, %s256
    %s271 = sphi 0, %s257
    %s275 = sphi 0, %s275
    %s277 = sphi 0, %s275
    %s278 = sphi 0, %s277
    %s292 = sphi 0, %s278
    %s296 = sphi 0, %s296
    %s298 = sphi 0, %s296
    %s299 = sphi 0, %s298
    %s313 = sphi 0, %s299
    %s317 = sphi 0, %s317
    %s319 = sphi 0, %s317
    %s320 = sphi 0, %s319
    %s334 = sphi 0, %s320
    %s338 = sphi 0, %s338
    %s340 = sphi 0, %s338
    %s341 = sphi 0, %s340
    %s355 = sphi 0, %s341
    %s359 = sphi 0, %s359
    %s361 = sphi 0, %s359
    %s362 = sphi 0, %s361
    %s376 = sphi 0, %s362
    %s380 = sphi 0, %s380
    %s382 = sphi 0, %s380
    %s383 = sphi 0, %s382
    %s397 = sphi 0, %s383
    %s401 = sphi 0, %s401
    %s403 = sphi 0, %s401
    %s404 = sphi 0, %s403
    %s418 = sphi 0, %s404
    %s422 = sphi 0, %s422
    %s424 = sphi 0, %s422
    %s425 = sphi 0, %s424
    %s439 = sphi 0, %s425
    %s443 = sphi 0, %s443
    %s445 = sphi 0, %s443
    %s446 = sphi 0, %s445
    %s460 = sphi 0, %s446
    %s466 = sphi 0, %s468
    %s469 = sphi 0, %s466
    %s470 = sphi 0, %s469
    %s486 = sphi 0, %s470
  $region4: #{_lambda_.1} parent=0 // loop_header_branch
    %29 = sbr.rel (%p27) target = $region8
  $region5: #{_lambda_.1} parent=0 // loop_body
    %s31 = ssub.s32 %s26, 1
    %s32 = ssub.s32 %s26, 2
    %s33 = sadd.s32 %s26, 1
    %s34 = ssub.s32 %s26, %s33
    %p35 = scmp.eq.s32.totalorder %s34, 0
    %s37 = sadd.s32 %s36, 1
    %s38 = scalar_select %p35, %s36, %s37
    %p41 = pneg %p35
    %p42 = scmp.eq.s32.totalorder %s26, 1
    %p43 = por %p41, %p42
    %p44 = scmp.ne.s32.totalorder %s36, %s39
    %p45 = scmp.eq.s32.totalorder %s26, 0
    %p46 = por %p44, %p45
    %p47 = scmp.ne.s32.totalorder %s36, %s39
    %p48 = scmp.eq.s32.totalorder %s31, 1
    %p49 = por %p47, %p48
    %p50 = scmp.ne.s32.totalorder %s39, %s40
    %p51 = scmp.eq.s32.totalorder %s31, 0
    %p52 = por %p50, %p51
    %p53 = scmp.ne.s32.totalorder %s39, %s40
    %p54 = scmp.eq.s32.totalorder %s32, 1
    %p55 = por %p53, %p54
    %p57 = scmp.ne.s32.totalorder %s40, %s56
    %p58 = scmp.eq.s32.totalorder %s32, 0
    %p59 = por %p57, %p58
    %s60 = ssub.s32 %s26, %s33
    %p61 = scmp.eq.s32.totalorder %s60, 0
    %s63 = sadd.s32 %s62, 1
    %s64 = scalar_select %p61, %s62, %s63
    %p67 = pneg %p61
    %p68 = scmp.eq.s32.totalorder %s26, 1
    %p69 = por %p67, %p68
    %p70 = scmp.ne.s32.totalorder %s62, %s65
    %p71 = scmp.eq.s32.totalorder %s26, 0
    %p72 = por %p70, %p71
    %p73 = scmp.ne.s32.totalorder %s62, %s65
    %p74 = scmp.eq.s32.totalorder %s31, 1
    %p75 = por %p73, %p74
    %p76 = scmp.ne.s32.totalorder %s65, %s66
    %p77 = scmp.eq.s32.totalorder %s31, 0
    %p78 = por %p76, %p77
    %p79 = scmp.ne.s32.totalorder %s65, %s66
    %p80 = scmp.eq.s32.totalorder %s32, 1
    %p81 = por %p79, %p80
    %p83 = scmp.ne.s32.totalorder %s66, %s82
    %p84 = scmp.eq.s32.totalorder %s32, 0
    %p85 = por %p83, %p84
    %s87 = sadd.s32 %s86, 1
    %p90 = scmp.eq.s32.totalorder %s26, 1
    %p91 = scmp.ne.s32.totalorder %s86, %s88
    %p92 = scmp.eq.s32.totalorder %s26, 0
    %p93 = por %p91, %p92
    %p94 = scmp.ne.s32.totalorder %s86, %s88
    %p95 = scmp.eq.s32.totalorder %s31, 1
    %p96 = por %p94, %p95
    %p97 = scmp.ne.s32.totalorder %s88, %s89
    %p98 = scmp.eq.s32.totalorder %s31, 0
    %p99 = por %p97, %p98
    %p100 = scmp.ne.s32.totalorder %s88, %s89
    %p101 = scmp.eq.s32.totalorder %s32, 1
    %p102 = por %p100, %p101
    %p104 = scmp.ne.s32.totalorder %s89, %s103
    %p105 = scmp.eq.s32.totalorder %s32, 0
    %p106 = por %p104, %p105
    %s108 = sadd.s32 %s107, 1
    %p111 = scmp.eq.s32.totalorder %s26, 1
    %p112 = scmp.ne.s32.totalorder %s107, %s109
    %p113 = scmp.eq.s32.totalorder %s26, 0
    %p114 = por %p112, %p113
    %p115 = scmp.ne.s32.totalorder %s107, %s109
    %p116 = scmp.eq.s32.totalorder %s31, 1
    %p117 = por %p115, %p116
    %p118 = scmp.ne.s32.totalorder %s109, %s110
    %p119 = scmp.eq.s32.totalorder %s31, 0
    %p120 = por %p118, %p119
    %p121 = scmp.ne.s32.totalorder %s109, %s110
    %p122 = scmp.eq.s32.totalorder %s32, 1
    %p123 = por %p121, %p122
    %p125 = scmp.ne.s32.totalorder %s110, %s124
    %p126 = scmp.eq.s32.totalorder %s32, 0
    %p127 = por %p125, %p126
    %s129 = sadd.s32 %s128, 1
    %p132 = scmp.eq.s32.totalorder %s26, 1
    %p133 = scmp.ne.s32.totalorder %s128, %s130
    %p134 = scmp.eq.s32.totalorder %s26, 0
    %p135 = por %p133, %p134
    %p136 = scmp.ne.s32.totalorder %s128, %s130
    %p137 = scmp.eq.s32.totalorder %s31, 1
    %p138 = por %p136, %p137
    %p139 = scmp.ne.s32.totalorder %s130, %s131
    %p140 = scmp.eq.s32.totalorder %s31, 0
    %p141 = por %p139, %p140
    %p142 = scmp.ne.s32.totalorder %s130, %s131
    %p143 = scmp.eq.s32.totalorder %s32, 1
    %p144 = por %p142, %p143
    %p146 = scmp.ne.s32.totalorder %s131, %s145
    %p147 = scmp.eq.s32.totalorder %s32, 0
    %p148 = por %p146, %p147
    %s150 = sadd.s32 %s149, 1
    %p153 = scmp.eq.s32.totalorder %s26, 1
    %p154 = scmp.ne.s32.totalorder %s149, %s151
    %p155 = scmp.eq.s32.totalorder %s26, 0
    %p156 = por %p154, %p155
    %p157 = scmp.ne.s32.totalorder %s149, %s151
    %p158 = scmp.eq.s32.totalorder %s31, 1
    %p159 = por %p157, %p158
    %p160 = scmp.ne.s32.totalorder %s151, %s152
    %p161 = scmp.eq.s32.totalorder %s31, 0
    %p162 = por %p160, %p161
    %p163 = scmp.ne.s32.totalorder %s151, %s152
    %p164 = scmp.eq.s32.totalorder %s32, 1
    %p165 = por %p163, %p164
    %p167 = scmp.ne.s32.totalorder %s152, %s166
    %p168 = scmp.eq.s32.totalorder %s32, 0
    %p169 = por %p167, %p168
    %s171 = sadd.s32 %s170, 1
    %p174 = scmp.eq.s32.totalorder %s26, 1
    %p175 = scmp.ne.s32.totalorder %s170, %s172
    %p176 = scmp.eq.s32.totalorder %s26, 0
    %p177 = por %p175, %p176
    %p178 = scmp.ne.s32.totalorder %s170, %s172
    %p179 = scmp.eq.s32.totalorder %s31, 1
    %p180 = por %p178, %p179
    %p181 = scmp.ne.s32.totalorder %s172, %s173
    %p182 = scmp.eq.s32.totalorder %s31, 0
    %p183 = por %p181, %p182
    %p184 = scmp.ne.s32.totalorder %s172, %s173
    %p185 = scmp.eq.s32.totalorder %s32, 1
    %p186 = por %p184, %p185
    %p188 = scmp.ne.s32.totalorder %s173, %s187
    %p189 = scmp.eq.s32.totalorder %s32, 0
    %p190 = por %p188, %p189
    %s192 = sadd.s32 %s191, 1
    %p195 = scmp.eq.s32.totalorder %s26, 1
    %p196 = scmp.ne.s32.totalorder %s191, %s193
    %p197 = scmp.eq.s32.totalorder %s26, 0
    %p198 = por %p196, %p197
    %p199 = scmp.ne.s32.totalorder %s191, %s193
    %p200 = scmp.eq.s32.totalorder %s31, 1
    %p201 = por %p199, %p200
    %p202 = scmp.ne.s32.totalorder %s193, %s194
    %p203 = scmp.eq.s32.totalorder %s31, 0
    %p204 = por %p202, %p203
    %p205 = scmp.ne.s32.totalorder %s193, %s194
    %p206 = scmp.eq.s32.totalorder %s32, 1
    %p207 = por %p205, %p206
    %p209 = scmp.ne.s32.totalorder %s194, %s208
    %p210 = scmp.eq.s32.totalorder %s32, 0
    %p211 = por %p209, %p210
    %s213 = sadd.s32 %s212, 1
    %p216 = scmp.eq.s32.totalorder %s26, 1
    %p217 = scmp.ne.s32.totalorder %s212, %s214
    %p218 = scmp.eq.s32.totalorder %s26, 0
    %p219 = por %p217, %p218
    %p220 = scmp.ne.s32.totalorder %s212, %s214
    %p221 = scmp.eq.s32.totalorder %s31, 1
    %p222 = por %p220, %p221
    %p223 = scmp.ne.s32.totalorder %s214, %s215
    %p224 = scmp.eq.s32.totalorder %s31, 0
    %p225 = por %p223, %p224
    %p226 = scmp.ne.s32.totalorder %s214, %s215
    %p227 = scmp.eq.s32.totalorder %s32, 1
    %p228 = por %p226, %p227
    %p230 = scmp.ne.s32.totalorder %s215, %s229
    %p231 = scmp.eq.s32.totalorder %s32, 0
    %p232 = por %p230, %p231
    %s234 = sadd.s32 %s233, 1
    %p237 = scmp.eq.s32.totalorder %s26, 1
    %p238 = scmp.ne.s32.totalorder %s233, %s235
    %p239 = scmp.eq.s32.totalorder %s26, 0
    %p240 = por %p238, %p239
    %p241 = scmp.ne.s32.totalorder %s233, %s235
    %p242 = scmp.eq.s32.totalorder %s31, 1
    %p243 = por %p241, %p242
    %p244 = scmp.ne.s32.totalorder %s235, %s236
    %p245 = scmp.eq.s32.totalorder %s31, 0
    %p246 = por %p244, %p245
    %p247 = scmp.ne.s32.totalorder %s235, %s236
    %p248 = scmp.eq.s32.totalorder %s32, 1
    %p249 = por %p247, %p248
    %p251 = scmp.ne.s32.totalorder %s236, %s250
    %p252 = scmp.eq.s32.totalorder %s32, 0
    %p253 = por %p251, %p252
    %s255 = sadd.s32 %s254, 1
    %p258 = scmp.eq.s32.totalorder %s26, 1
    %p259 = scmp.ne.s32.totalorder %s254, %s256
    %p260 = scmp.eq.s32.totalorder %s26, 0
    %p261 = por %p259, %p260
    %p262 = scmp.ne.s32.totalorder %s254, %s256
    %p263 = scmp.eq.s32.totalorder %s31, 1
    %p264 = por %p262, %p263
    %p265 = scmp.ne.s32.totalorder %s256, %s257
    %p266 = scmp.eq.s32.totalorder %s31, 0
    %p267 = por %p265, %p266
    %p268 = scmp.ne.s32.totalorder %s256, %s257
    %p269 = scmp.eq.s32.totalorder %s32, 1
    %p270 = por %p268, %p269
    %p272 = scmp.ne.s32.totalorder %s257, %s271
    %p273 = scmp.eq.s32.totalorder %s32, 0
    %p274 = por %p272, %p273
    %s276 = sadd.s32 %s275, 1
    %p279 = scmp.eq.s32.totalorder %s26, 1
    %p280 = scmp.ne.s32.totalorder %s275, %s277
    %p281 = scmp.eq.s32.totalorder %s26, 0
    %p282 = por %p280, %p281
    %p283 = scmp.ne.s32.totalorder %s275, %s277
    %p284 = scmp.eq.s32.totalorder %s31, 1
    %p285 = por %p283, %p284
    %p286 = scmp.ne.s32.totalorder %s277, %s278
    %p287 = scmp.eq.s32.totalorder %s31, 0
    %p288 = por %p286, %p287
    %p289 = scmp.ne.s32.totalorder %s277, %s278
    %p290 = scmp.eq.s32.totalorder %s32, 1
    %p291 = por %p289, %p290
    %p293 = scmp.ne.s32.totalorder %s278, %s292
    %p294 = scmp.eq.s32.totalorder %s32, 0
    %p295 = por %p293, %p294
    %s297 = sadd.s32 %s296, 1
    %p300 = scmp.eq.s32.totalorder %s26, 1
    %p301 = scmp.ne.s32.totalorder %s296, %s298
    %p302 = scmp.eq.s32.totalorder %s26, 0
    %p303 = por %p301, %p302
    %p304 = scmp.ne.s32.totalorder %s296, %s298
    %p305 = scmp.eq.s32.totalorder %s31, 1
    %p306 = por %p304, %p305
    %p307 = scmp.ne.s32.totalorder %s298, %s299
    %p308 = scmp.eq.s32.totalorder %s31, 0
    %p309 = por %p307, %p308
    %p310 = scmp.ne.s32.totalorder %s298, %s299
    %p311 = scmp.eq.s32.totalorder %s32, 1
    %p312 = por %p310, %p311
    %p314 = scmp.ne.s32.totalorder %s299, %s313
    %p315 = scmp.eq.s32.totalorder %s32, 0
    %p316 = por %p314, %p315
    %s318 = sadd.s32 %s317, 1
    %p321 = scmp.eq.s32.totalorder %s26, 1
    %p322 = scmp.ne.s32.totalorder %s317, %s319
    %p323 = scmp.eq.s32.totalorder %s26, 0
    %p324 = por %p322, %p323
    %p325 = scmp.ne.s32.totalorder %s317, %s319
    %p326 = scmp.eq.s32.totalorder %s31, 1
    %p327 = por %p325, %p326
    %p328 = scmp.ne.s32.totalorder %s319, %s320
    %p329 = scmp.eq.s32.totalorder %s31, 0
    %p330 = por %p328, %p329
    %p331 = scmp.ne.s32.totalorder %s319, %s320
    %p332 = scmp.eq.s32.totalorder %s32, 1
    %p333 = por %p331, %p332
    %p335 = scmp.ne.s32.totalorder %s320, %s334
    %p336 = scmp.eq.s32.totalorder %s32, 0
    %p337 = por %p335, %p336
    %s339 = sadd.s32 %s338, 1
    %p342 = scmp.eq.s32.totalorder %s26, 1
    %p343 = scmp.ne.s32.totalorder %s338, %s340
    %p344 = scmp.eq.s32.totalorder %s26, 0
    %p345 = por %p343, %p344
    %p346 = scmp.ne.s32.totalorder %s338, %s340
    %p347 = scmp.eq.s32.totalorder %s31, 1
    %p348 = por %p346, %p347
    %p349 = scmp.ne.s32.totalorder %s340, %s341
    %p350 = scmp.eq.s32.totalorder %s31, 0
    %p351 = por %p349, %p350
    %p352 = scmp.ne.s32.totalorder %s340, %s341
    %p353 = scmp.eq.s32.totalorder %s32, 1
    %p354 = por %p352, %p353
    %p356 = scmp.ne.s32.totalorder %s341, %s355
    %p357 = scmp.eq.s32.totalorder %s32, 0
    %p358 = por %p356, %p357
    %s360 = sadd.s32 %s359, 1
    %p363 = scmp.eq.s32.totalorder %s26, 1
    %p364 = scmp.ne.s32.totalorder %s359, %s361
    %p365 = scmp.eq.s32.totalorder %s26, 0
    %p366 = por %p364, %p365
    %p367 = scmp.ne.s32.totalorder %s359, %s361
    %p368 = scmp.eq.s32.totalorder %s31, 1
    %p369 = por %p367, %p368
    %p370 = scmp.ne.s32.totalorder %s361, %s362
    %p371 = scmp.eq.s32.totalorder %s31, 0
    %p372 = por %p370, %p371
    %p373 = scmp.ne.s32.totalorder %s361, %s362
    %p374 = scmp.eq.s32.totalorder %s32, 1
    %p375 = por %p373, %p374
    %p377 = scmp.ne.s32.totalorder %s362, %s376
    %p378 = scmp.eq.s32.totalorder %s32, 0
    %p379 = por %p377, %p378
    %s381 = sadd.s32 %s380, 1
    %p384 = scmp.eq.s32.totalorder %s26, 1
    %p385 = scmp.ne.s32.totalorder %s380, %s382
    %p386 = scmp.eq.s32.totalorder %s26, 0
    %p387 = por %p385, %p386
    %p388 = scmp.ne.s32.totalorder %s380, %s382
    %p389 = scmp.eq.s32.totalorder %s31, 1
    %p390 = por %p388, %p389
    %p391 = scmp.ne.s32.totalorder %s382, %s383
    %p392 = scmp.eq.s32.totalorder %s31, 0
    %p393 = por %p391, %p392
    %p394 = scmp.ne.s32.totalorder %s382, %s383
    %p395 = scmp.eq.s32.totalorder %s32, 1
    %p396 = por %p394, %p395
    %p398 = scmp.ne.s32.totalorder %s383, %s397
    %p399 = scmp.eq.s32.totalorder %s32, 0
    %p400 = por %p398, %p399
    %s402 = sadd.s32 %s401, 1
    %p405 = scmp.eq.s32.totalorder %s26, 1
    %p406 = scmp.ne.s32.totalorder %s401, %s403
    %p407 = scmp.eq.s32.totalorder %s26, 0
    %p408 = por %p406, %p407
    %p409 = scmp.ne.s32.totalorder %s401, %s403
    %p410 = scmp.eq.s32.totalorder %s31, 1
    %p411 = por %p409, %p410
    %p412 = scmp.ne.s32.totalorder %s403, %s404
    %p413 = scmp.eq.s32.totalorder %s31, 0
    %p414 = por %p412, %p413
    %p415 = scmp.ne.s32.totalorder %s403, %s404
    %p416 = scmp.eq.s32.totalorder %s32, 1
    %p417 = por %p415, %p416
    %p419 = scmp.ne.s32.totalorder %s404, %s418
    %p420 = scmp.eq.s32.totalorder %s32, 0
    %p421 = por %p419, %p420
    %s423 = sadd.s32 %s422, 1
    %p426 = scmp.eq.s32.totalorder %s26, 1
    %p427 = scmp.ne.s32.totalorder %s422, %s424
    %p428 = scmp.eq.s32.totalorder %s26, 0
    %p429 = por %p427, %p428
    %p430 = scmp.ne.s32.totalorder %s422, %s424
    %p431 = scmp.eq.s32.totalorder %s31, 1
    %p432 = por %p430, %p431
    %p433 = scmp.ne.s32.totalorder %s424, %s425
    %p434 = scmp.eq.s32.totalorder %s31, 0
    %p435 = por %p433, %p434
    %p436 = scmp.ne.s32.totalorder %s424, %s425
    %p437 = scmp.eq.s32.totalorder %s32, 1
    %p438 = por %p436, %p437
    %p440 = scmp.ne.s32.totalorder %s425, %s439
    %p441 = scmp.eq.s32.totalorder %s32, 0
    %p442 = por %p440, %p441
    %s444 = sadd.s32 %s443, 1
    %p447 = scmp.eq.s32.totalorder %s26, 1
    %p448 = scmp.ne.s32.totalorder %s443, %s445
    %p449 = scmp.eq.s32.totalorder %s26, 0
    %p450 = por %p448, %p449
    %p451 = scmp.ne.s32.totalorder %s443, %s445
    %p452 = scmp.eq.s32.totalorder %s31, 1
    %p453 = por %p451, %p452
    %p454 = scmp.ne.s32.totalorder %s445, %s446
    %p455 = scmp.eq.s32.totalorder %s31, 0
    %p456 = por %p454, %p455
    %p457 = scmp.ne.s32.totalorder %s445, %s446
    %p458 = scmp.eq.s32.totalorder %s32, 1
    %p459 = por %p457, %p458
    %p461 = scmp.ne.s32.totalorder %s446, %s460
    %p462 = scmp.eq.s32.totalorder %s32, 0
    %p463 = por %p461, %p462
    %s464 = ssub.s32 %s26, %s33
    %p465 = scmp.eq.s32.totalorder %s464, 0
    %s467 = sadd.s32 %s466, 1
    %s468 = scalar_select %p465, %s466, %s467
    %p471 = pneg %p465
    %p472 = scmp.eq.s32.totalorder %s26, 1
    %p473 = por %p471, %p472
    %p474 = scmp.ne.s32.totalorder %s466, %s469
    %p475 = scmp.eq.s32.totalorder %s26, 0
    %p476 = por %p474, %p475
    %p477 = scmp.ne.s32.totalorder %s466, %s469
    %p478 = scmp.eq.s32.totalorder %s31, 1
    %p479 = por %p477, %p478
    %p480 = scmp.ne.s32.totalorder %s469, %s470
    %p481 = scmp.eq.s32.totalorder %s31, 0
    %p482 = por %p480, %p481
    %p483 = scmp.ne.s32.totalorder %s469, %s470
    %p484 = scmp.eq.s32.totalorder %s32, 1
    %p485 = por %p483, %p484
    %p487 = scmp.ne.s32.totalorder %s470, %s486
    %p488 = scmp.eq.s32.totalorder %s32, 0
    %p489 = por %p487, %p488
    %p490 = scmp.le.s32.totalorder 1, %s26
    %p491 = scmp.lt.s32.totalorder %s26, 3
    %p492 = pnand %p490, %p491
    %p493 = pneg %p492
    // Predicated region
    $region9: #{_lambda_.1} parent=5 // pred_check
      _
    $region10: #{_lambda_.1} parent=5 // pred_check_branch
      %495 = sbr.rel (%p492) target = $region12
    $region11: #{_lambda_.1} parent=5 // pred_region
      %s496 = ssub.s32 %s26, 1
      // Predicated region
      $region13: #{_lambda_.1} parent=11 // pred_check
        %p497 = pneg %p99
      $region14: #{_lambda_.1} parent=11 // pred_check_branch
        %499 = sbr.rel (%p497) target = $region16
      $region15: #{_lambda_.1} parent=11 // pred_region
        _
      $region16: #{_lambda_.1} parent=11 // pred_fallthru
        _
      // Predicated region
      $region17: #{_lambda_.1} parent=11 // pred_check
        %p500 = pneg %p120
      $region18: #{_lambda_.1} parent=11 // pred_check_branch
        %502 = sbr.rel (%p500) target = $region20
      $region19: #{_lambda_.1} parent=11 // pred_region
        _
      $region20: #{_lambda_.1} parent=11 // pred_fallthru
        _
      // Predicated region
      $region21: #{_lambda_.1} parent=11 // pred_check
        %p503 = pneg %p141
      $region22: #{_lambda_.1} parent=11 // pred_check_branch
        %505 = sbr.rel (%p503) target = $region24
      $region23: #{_lambda_.1} parent=11 // pred_region
        _
      $region24: #{_lambda_.1} parent=11 // pred_fallthru
        _
      // Predicated region
      $region25: #{_lambda_.1} parent=11 // pred_check
        %p506 = pneg %p162
      $region26: #{_lambda_.1} parent=11 // pred_check_branch
        %508 = sbr.rel (%p506) target = $region28
      $region27: #{_lambda_.1} parent=11 // pred_region
        _
      $region28: #{_lambda_.1} parent=11 // pred_fallthru
        _
      // Predicated region
      $region29: #{_lambda_.1} parent=11 // pred_check
        %p509 = pneg %p183
      $region30: #{_lambda_.1} parent=11 // pred_check_branch
        %511 = sbr.rel (%p509) target = $region32
      $region31: #{_lambda_.1} parent=11 // pred_region
        _
      $region32: #{_lambda_.1} parent=11 // pred_fallthru
        _
      // Predicated region
      $region33: #{_lambda_.1} parent=11 // pred_check
        %p512 = pneg %p204
      $region34: #{_lambda_.1} parent=11 // pred_check_branch
        %514 = sbr.rel (%p512) target = $region36
      $region35: #{_lambda_.1} parent=11 // pred_region
        _
      $region36: #{_lambda_.1} parent=11 // pred_fallthru
        _
      // Predicated region
      $region37: #{_lambda_.1} parent=11 // pred_check
        %p515 = pneg %p225
      $region38: #{_lambda_.1} parent=11 // pred_check_branch
        %517 = sbr.rel (%p515) target = $region40
      $region39: #{_lambda_.1} parent=11 // pred_region
        _
      $region40: #{_lambda_.1} parent=11 // pred_fallthru
        _
      // Predicated region
      $region41: #{_lambda_.1} parent=11 // pred_check
        %p518 = pneg %p246
      $region42: #{_lambda_.1} parent=11 // pred_check_branch
        %520 = sbr.rel (%p518) target = $region44
      $region43: #{_lambda_.1} parent=11 // pred_region
        _
      $region44: #{_lambda_.1} parent=11 // pred_fallthru
        _
      // Predicated region
      $region45: #{_lambda_.1} parent=11 // pred_check
        %p521 = pneg %p267
      $region46: #{_lambda_.1} parent=11 // pred_check_branch
        %523 = sbr.rel (%p521) target = $region48
      $region47: #{_lambda_.1} parent=11 // pred_region
        _
      $region48: #{_lambda_.1} parent=11 // pred_fallthru
        _
      // Predicated region
      $region49: #{_lambda_.1} parent=11 // pred_check
        %p524 = pneg %p288
      $region50: #{_lambda_.1} parent=11 // pred_check_branch
        %526 = sbr.rel (%p524) target = $region52
      $region51: #{_lambda_.1} parent=11 // pred_region
        _
      $region52: #{_lambda_.1} parent=11 // pred_fallthru
        _
      // Predicated region
      $region53: #{_lambda_.1} parent=11 // pred_check
        %p527 = pneg %p309
      $region54: #{_lambda_.1} parent=11 // pred_check_branch
        %529 = sbr.rel (%p527) target = $region56
      $region55: #{_lambda_.1} parent=11 // pred_region
        _
      $region56: #{_lambda_.1} parent=11 // pred_fallthru
        _
      // Predicated region
      $region57: #{_lambda_.1} parent=11 // pred_check
        %p530 = pneg %p330
      $region58: #{_lambda_.1} parent=11 // pred_check_branch
        %532 = sbr.rel (%p530) target = $region60
      $region59: #{_lambda_.1} parent=11 // pred_region
        _
      $region60: #{_lambda_.1} parent=11 // pred_fallthru
        _
      // Predicated region
      $region61: #{_lambda_.1} parent=11 // pred_check
        %p533 = pneg %p351
      $region62: #{_lambda_.1} parent=11 // pred_check_branch
        %535 = sbr.rel (%p533) target = $region64
      $region63: #{_lambda_.1} parent=11 // pred_region
        _
      $region64: #{_lambda_.1} parent=11 // pred_fallthru
        _
      // Predicated region
      $region65: #{_lambda_.1} parent=11 // pred_check
        %p536 = pneg %p372
      $region66: #{_lambda_.1} parent=11 // pred_check_branch
        %538 = sbr.rel (%p536) target = $region68
      $region67: #{_lambda_.1} parent=11 // pred_region
        _
      $region68: #{_lambda_.1} parent=11 // pred_fallthru
        _
      // Predicated region
      $region69: #{_lambda_.1} parent=11 // pred_check
        %p539 = pneg %p393
      $region70: #{_lambda_.1} parent=11 // pred_check_branch
        %541 = sbr.rel (%p539) target = $region72
      $region71: #{_lambda_.1} parent=11 // pred_region
        _
      $region72: #{_lambda_.1} parent=11 // pred_fallthru
        _
      // Predicated region
      $region73: #{_lambda_.1} parent=11 // pred_check
        %p542 = pneg %p414
      $region74: #{_lambda_.1} parent=11 // pred_check_branch
        %544 = sbr.rel (%p542) target = $region76
      $region75: #{_lambda_.1} parent=11 // pred_region
        _
      $region76: #{_lambda_.1} parent=11 // pred_fallthru
        _
      // Predicated region
      $region77: #{_lambda_.1} parent=11 // pred_check
        %p545 = pneg %p435
      $region78: #{_lambda_.1} parent=11 // pred_check_branch
        %547 = sbr.rel (%p545) target = $region80
      $region79: #{_lambda_.1} parent=11 // pred_region
        _
      $region80: #{_lambda_.1} parent=11 // pred_fallthru
        _
      // Predicated region
      $region81: #{_lambda_.1} parent=11 // pred_check
        %p548 = pneg %p456
      $region82: #{_lambda_.1} parent=11 // pred_check_branch
        %550 = sbr.rel (%p548) target = $region84
      $region83: #{_lambda_.1} parent=11 // pred_region
        _
      $region84: #{_lambda_.1} parent=11 // pred_fallthru
        _
    $region12: #{_lambda_.1} parent=5 // pred_fallthru
      _
    %p551 = scmp.lt.s32.totalorder %s26, 2
    // Predicated region
    $region85: #{_lambda_.1} parent=5 // pred_check
      %p552 = pneg %p551
    $region86: #{_lambda_.1} parent=5 // pred_check_branch
      %554 = sbr.rel (%p552) target = $region88
    $region87: #{_lambda_.1} parent=5 // pred_region
      // Predicated region
      $region89: #{_lambda_.1} parent=87 // pred_check
        %p555 = pneg %p46
      $region90: #{_lambda_.1} parent=87 // pred_check_branch
        %557 = sbr.rel (%p555) target = $region92
      $region91: #{_lambda_.1} parent=87 // pred_region
        %p558 = scmp.lt.s32.totalorder %s26, 1
        %s559 = scalar_select %p558, %s26, 1
        %s560 = smul.addr %s559, 4
        %s561 = scalar_lea.vmem %s0, %s560
      $region92: #{_lambda_.1} parent=87 // pred_fallthru
        _
      // Predicated region
      $region93: #{_lambda_.1} parent=87 // pred_check
        %p562 = pneg %p72
      $region94: #{_lambda_.1} parent=87 // pred_check_branch
        %564 = sbr.rel (%p562) target = $region96
      $region95: #{_lambda_.1} parent=87 // pred_region
        %p565 = scmp.lt.s32.totalorder %s26, 1
        %s566 = scalar_select %p565, %s26, 1
        %s567 = scalar_lea.vmem %s1, %s566
      $region96: #{_lambda_.1} parent=87 // pred_fallthru
        _
    $region88: #{_lambda_.1} parent=5 // pred_fallthru
      _
    %p568 = scmp.le.s32.totalorder 1, %s26
    %p569 = scmp.lt.s32.totalorder %s26, 3
    %p570 = pnand %p568, %p569
    %p571 = pneg %p570
    // Predicated region
    $region97: #{_lambda_.1} parent=5 // pred_check
      _
    $region98: #{_lambda_.1} parent=5 // pred_check_branch
      %573 = sbr.rel (%p570) target = $region100
    $region99: #{_lambda_.1} parent=5 // pred_region
      %s574 = ssub.s32 %s26, 1
      %p575 = scmp.lt.s32.totalorder %s31, 1
      %s576 = scalar_select %p575, %s31, 1
      %s577 = smul.addr %s576, 4
      %s578 = scalar_lea.vmem %s0, %s577
      %p579 = pneg %p52
      %p580 = pneg %p49
      %p581 = scmp.lt.s32.totalorder %s31, 1
      %s582 = scalar_select %p581, %s31, 1
      %s583 = scalar_lea.vmem %s1, %s582
      %p584 = pneg %p78
      %p585 = pneg %p75
      %p586 = pneg %p99
      %p587 = pneg %p96
      %p588 = pneg %p120
      %p589 = pneg %p117
      %p590 = pneg %p141
      %p591 = pneg %p138
      %p592 = pneg %p162
      %p593 = pneg %p159
      %p594 = pneg %p183
      %p595 = pneg %p180
      %p596 = pneg %p204
      %p597 = pneg %p201
      %p598 = pneg %p225
      %p599 = pneg %p222
      %p600 = pneg %p246
      %p601 = pneg %p243
      %p602 = pneg %p267
      %p603 = pneg %p264
      %p604 = pneg %p288
      %p605 = pneg %p285
      %p606 = pneg %p309
      %p607 = pneg %p306
      %p608 = pneg %p330
      %p609 = pneg %p327
      %p610 = pneg %p351
      %p611 = pneg %p348
      %p612 = pneg %p372
      %p613 = pneg %p369
      %p614 = pneg %p393
      %p615 = pneg %p390
      %p616 = pneg %p414
      %p617 = pneg %p411
      %p618 = pneg %p435
      %p619 = pneg %p432
      %p620 = pneg %p456
      %p621 = pneg %p453
      %p622 = pneg %p482
      %p623 = pneg %p479
      %p624 = scmp.lt.s32.totalorder %s31, 1
      %s625 = scalar_select %p624, %s31, 1
      %s626 = scalar_lea.vmem %s20, %s625
      %p627 = scmp.lt.s32.totalorder %s31, 1
      %s628 = scalar_select %p627, %s31, 1
      %s629 = smul.addr %s628, 4
      %s630 = scalar_lea.vmem %s0, %s629
      %p631 = scmp.lt.s32.totalorder %s31, 1
      %s632 = scalar_select %p631, %s31, 1
      %s633 = scalar_lea.vmem %s1, %s632
      %p634 = scmp.lt.s32.totalorder %s31, 1
      %s635 = scalar_select %p634, %s31, 1
      %s636 = scalar_lea.vmem %s20, %s635
      %v638 = vld [vmem:[%s630] sm:$0xf]
      %v639 = vunpack.c.l.bf16 %v638
      %v640 = vld [vmem:[%s2] sm:$0x1]
      %v641 = vld [vmem:[%s3] sm:$0x1]
      %vm642 = vcmask 261120
      %v643 = vsel %vm642, %v639, 0.0
      %644 = vadd.xlane.f32.xlu0 %v643
      %v645 = vpop.xlane.xlu0 %644
      %v646 = vrcp.pop 32.0
      %v647 = vmul.f32 32.0, %v646
      %v648 = vsub.f32 1.0, %v647
      %v649 = vmul.f32 %v646, %v648
      %v650 = vadd.f32 %v646, %v649
      %vm651 = vweird.f32 %v646
      %v652 = vsel %vm651, %v646, %v650
      %v653 = vmul.f32 %v645, %v652
      %v654 = vsub.f32 %v639, %v653
      %v655 = vmul.f32 %v654, %v654
      %v656 = vsel %vm642, %v655, 0.0
      %657 = vadd.xlane.f32.xlu0 %v656
      %v658 = vpop.xlane.xlu0 %657
      %v659 = vmul.f32 %v658, %v652
      %v660 = vadd.f32 %v659, 1e-05
      %v661 = vrsqrt.pop %v660
      %v662 = vmul.f32 %v661, %v660
      %v663 = vmul.f32 %v662, %v661
      %v664 = vmul.f32 0.5, %v663
      %v665 = vsub.f32 1.5, %v664
      %v666 = vmul.f32 %v661, %v665
      %vm667 = vweird.f32 %v660
      %vm668 = vweird.f32 %v661
      %vm669 = vmor %vm667, %vm668
      %v670 = vsel %vm669, %v661, %v666
      %v671 = vmul.f32 %v654, %v670
      %v672 = vunpack.c.l.bf16 %v640
      %v673 = vperm.slane %v672, 0
      %v674 = vmul.f32 %v671, %v673
      %v675 = vunpack.c.l.bf16 %v641
      %v676 = vperm.slane %v675, 0
      %v677 = vadd.f32 %v674, %v676
      %v678 = vpack.c.bf16 %v677, %v677
      %v679 = vld [vmem:[%s633] sm:$0x1]
      %v680 = vsub.f32 1.0, %v679
      %v681 = vmul.f32 %v680, -1e+09
      %v682 = vld [vmem:[%s4] sm:$0xf]
      %v683 = vld [vmem:[%s4 + $0x4] sm:$0xf]
      %v684 = vld [vmem:[%s4 + $0x8] sm:$0xf]
      %v685 = vld [vmem:[%s4 + $0xc] sm:$0xf]
      %v686 = vld [vmem:[%s5] sm:$0x1]
      %v687 = vunpack.c.l.bf16 %v686
      %v688 = vperm.slane %v687, 0
      %v693 = vunpack.c.l.b16 %v682
      %v694 = vunpack.c.l.b16 %v683
      %v695 = vunpack.c.l.b16 %v684
      %v696 = vunpack.c.l.b16 %v685
      %v697 = vpack.c.b16 %v694, %v693
      %v698 = vpack.c.b16 %v696, %v695
      %v702 = vsel %vm642, %v678, 0
      %704 = vmatpush.bf16.msra.mxu0 0
      %705 = vmatpush.bf16.msra.mxu0 0
      %706 = vmatpush.bf16.msra.mxu0 0
      %707 = vmatpush.bf16.msra.mxu0 0
      %708 = vmatpush.bf16.msra.mxu0 0
      %709 = vmatpush.bf16.msra.mxu0 0
      %710 = vmatpush.bf16.msra.mxu0 %v698
      %711 = vmatpush.bf16.msra.mxu0 %v697
      %712 = vmatmul.bf16.gmra.mxu0 %v702
      %v713 = vpop.f32.mrf.mxu0
      %v714 = vadd.f32 %v688, %v713
      %v715 = vpop.f32.mrf.mxu0
      %716 = vdwg.mxu0
      %s717 = scalar_lea.vmem %s4, 32
      %v718 = vld [vmem:[%s717] sm:$0xf]
      %v719 = vld [vmem:[%s717 + $0x4] sm:$0xf]
      %v720 = vld [vmem:[%s717 + $0x8] sm:$0xf]
      %v721 = vld [vmem:[%s717 + $0xc] sm:$0xf]
      %s722 = scalar_lea.vmem %s5, 2
      %v723 = vld [vmem:[%s722] sm:$0x1]
      %v724 = vunpack.c.l.bf16 %v723
      %v725 = vperm.slane %v724, 0
      %v730 = vunpack.c.l.b16 %v718
      %v731 = vunpack.c.l.b16 %v719
      %v732 = vunpack.c.l.b16 %v720
      %v733 = vunpack.c.l.b16 %v721
      %v734 = vpack.c.b16 %v731, %v730
      %v735 = vpack.c.b16 %v733, %v732
      %738 = vmatpush.bf16.msra.mxu0 0
      %739 = vmatpush.bf16.msra.mxu0 0
      %740 = vmatpush.bf16.msra.mxu0 0
      %741 = vmatpush.bf16.msra.mxu0 0
      %742 = vmatpush.bf16.msra.mxu0 0
      %743 = vmatpush.bf16.msra.mxu0 0
      %744 = vmatpush.bf16.msra.mxu0 %v735
      %745 = vmatpush.bf16.msra.mxu0 %v734
      %746 = vmatmul.bf16.gmra.mxu0 %v702
      %v747 = vpop.f32.mrf.mxu0
      %v748 = vadd.f32 %v725, %v747
      %v749 = vpop.f32.mrf.mxu0
      %750 = vdwg.mxu0
      %s751 = scalar_lea.vmem %s4, 64
      %v752 = vld [vmem:[%s751] sm:$0xf]
      %v753 = vld [vmem:[%s751 + $0x4] sm:$0xf]
      %v754 = vld [vmem:[%s751 + $0x8] sm:$0xf]
      %v755 = vld [vmem:[%s751 + $0xc] sm:$0xf]
      %s756 = scalar_lea.vmem %s5, 4
      %v757 = vld [vmem:[%s756] sm:$0x1]
      %v758 = vunpack.c.l.bf16 %v757
      %v759 = vperm.slane %v758, 0
      %v764 = vunpack.c.l.b16 %v752
      %v765 = vunpack.c.l.b16 %v753
      %v766 = vunpack.c.l.b16 %v754
      %v767 = vunpack.c.l.b16 %v755
      %v768 = vpack.c.b16 %v765, %v764
      %v769 = vpack.c.b16 %v767, %v766
      %772 = vmatpush.bf16.msra.mxu0 0
      %773 = vmatpush.bf16.msra.mxu0 0
      %774 = vmatpush.bf16.msra.mxu0 0
      %775 = vmatpush.bf16.msra.mxu0 0
      %776 = vmatpush.bf16.msra.mxu0 0
      %777 = vmatpush.bf16.msra.mxu0 0
      %778 = vmatpush.bf16.msra.mxu0 %v769
      %779 = vmatpush.bf16.msra.mxu0 %v768
      %780 = vmatmul.bf16.gmra.mxu0 %v702
      %v781 = vpop.f32.mrf.mxu0
      %v782 = vadd.f32 %v759, %v781
      %v783 = vpop.f32.mrf.mxu0
      %784 = vdwg.mxu0
      %v785 = vmul.f32 %v714, 0.25
      %v786 = vpack.c.bf16 %v785, %v785
      %v787 = vpack.c.bf16 %v748, %v748
      %v788 = vpack.c.bf16 %v782, %v782
      %v790 = vperm.slane %v681, 0
      %vm792 = vcmask 130048
      %v794 = vsel %vm792, %v786, 0
      %v797 = vsel %vm792, %v787, 0
      %799 = vmatpush.bf16.xpose.msra.mxu0 0
      %800 = vmatpush.bf16.xpose.msra.mxu0 0
      %801 = vmatpush.bf16.xpose.msra.mxu0 0
      %802 = vmatpush.bf16.xpose.msra.mxu0 0
      %803 = vmatpush.bf16.xpose.msra.mxu0 0
      %804 = vmatpush.bf16.xpose.msra.mxu0 0
      %805 = vmatpush.bf16.xpose.msra.mxu0 0
      %806 = vmatpush.bf16.xpose.msra.mxu0 %v797
      %807 = vmatmul.bf16.gmra.mxu0 %v794
      %v808 = vpop.f32.mrf.mxu0
      %v809 = vadd.f32 %v790, %v808
      %v810 = vpop.f32.mrf.mxu0
      %811 = vdwg.mxu0
      %vm812 = vcmask 64512
      %v813 = vsel %vm812, %v809, -inf
      %814 = vmax.xlane.f32.xlu0 %v813
      %v815 = vpop.xlane.xlu0 %814
      %v816 = vsub.f32 %v809, %v815
      %v817 = vmul.f32 %v816, 1.442695
      %v818 = vpow.pop %v817
      %v819 = vsel %vm812, %v818, 0.0
      %820 = vadd.xlane.f32.xlu0 %v819
      %v821 = vpop.xlane.xlu0 %820
      %v822 = vrcp.pop %v821
      %v823 = vmul.f32 %v818, %v822
      %v824 = vpack.c.bf16 %v823, %v823
      %v826 = vsel %vm812, %v824, 0
      %vm828 = vcmask 1043456
      %v830 = vsel %vm828, %v788, 0
      %832 = vmatpush.bf16.msra.mxu0 0
      %833 = vmatpush.bf16.msra.mxu0 0
      %834 = vmatpush.bf16.msra.mxu0 0
      %835 = vmatpush.bf16.msra.mxu0 0
      %836 = vmatpush.bf16.msra.mxu0 0
      %837 = vmatpush.bf16.msra.mxu0 0
      %838 = vmatpush.bf16.msra.mxu0 0
      %839 = vmatpush.bf16.msra.mxu0 %v830
      %840 = vmatmul.bf16.gmra.mxu0 %v826
      %v841 = vpop.f32.mrf.mxu0
      %v842 = vadd.f32 0.0, %v841
      %v843 = vpop.f32.mrf.mxu0
      %844 = vdwg.mxu0
      %v845 = vpack.c.bf16 %v842, %v842
      %v846 = vld [vmem:[%s6] sm:$0xf]
      %v847 = vld [vmem:[%s6 + $0x4] sm:$0xf]
      %s848 = scalar_lea.vmem %s4, 16
      %v849 = vld [vmem:[%s848] sm:$0xf]
      %v850 = vld [vmem:[%s848 + $0x4] sm:$0xf]
      %v851 = vld [vmem:[%s848 + $0x8] sm:$0xf]
      %v852 = vld [vmem:[%s848 + $0xc] sm:$0xf]
      %s853 = scalar_lea.vmem %s5, 1
      %v854 = vld [vmem:[%s853] sm:$0x1]
      %v855 = vunpack.c.l.bf16 %v854
      %v856 = vperm.slane %v855, 0
      %v861 = vunpack.c.l.b16 %v849
      %v862 = vunpack.c.l.b16 %v850
      %v863 = vunpack.c.l.b16 %v851
      %v864 = vunpack.c.l.b16 %v852
      %v865 = vpack.c.b16 %v862, %v861
      %v866 = vpack.c.b16 %v864, %v863
      %869 = vmatpush.bf16.msra.mxu0 0
      %870 = vmatpush.bf16.msra.mxu0 0
      %871 = vmatpush.bf16.msra.mxu0 0
      %872 = vmatpush.bf16.msra.mxu0 0
      %873 = vmatpush.bf16.msra.mxu0 0
      %874 = vmatpush.bf16.msra.mxu0 0
      %875 = vmatpush.bf16.msra.mxu0 %v866
      %876 = vmatpush.bf16.msra.mxu0 %v865
      %877 = vmatmul.bf16.gmra.mxu0 %v702
      %v878 = vpop.f32.mrf.mxu0
      %v879 = vadd.f32 %v856, %v878
      %v880 = vpop.f32.mrf.mxu0
      %881 = vdwg.mxu0
      %s882 = scalar_lea.vmem %s4, 48
      %v883 = vld [vmem:[%s882] sm:$0xf]
      %v884 = vld [vmem:[%s882 + $0x4] sm:$0xf]
      %v885 = vld [vmem:[%s882 + $0x8] sm:$0xf]
      %v886 = vld [vmem:[%s882 + $0xc] sm:$0xf]
      %s887 = scalar_lea.vmem %s5, 3
      %v888 = vld [vmem:[%s887] sm:$0x1]
      %v889 = vunpack.c.l.bf16 %v888
      %v890 = vperm.slane %v889, 0
      %v895 = vunpack.c.l.b16 %v883
      %v896 = vunpack.c.l.b16 %v884
      %v897 = vunpack.c.l.b16 %v885
      %v898 = vunpack.c.l.b16 %v886
      %v899 = vpack.c.b16 %v896, %v895
      %v900 = vpack.c.b16 %v898, %v897
      %903 = vmatpush.bf16.msra.mxu0 0
      %904 = vmatpush.bf16.msra.mxu0 0
      %905 = vmatpush.bf16.msra.mxu0 0
      %906 = vmatpush.bf16.msra.mxu0 0
      %907 = vmatpush.bf16.msra.mxu0 0
      %908 = vmatpush.bf16.msra.mxu0 0
      %909 = vmatpush.bf16.msra.mxu0 %v900
      %910 = vmatpush.bf16.msra.mxu0 %v899
      %911 = vmatmul.bf16.gmra.mxu0 %v702
      %v912 = vpop.f32.mrf.mxu0
      %v913 = vadd.f32 %v890, %v912
      %v914 = vpop.f32.mrf.mxu0
      %915 = vdwg.mxu0
      %s916 = scalar_lea.vmem %s4, 80
      %v917 = vld [vmem:[%s916] sm:$0xf]
      %v918 = vld [vmem:[%s916 + $0x4] sm:$0xf]
      %v919 = vld [vmem:[%s916 + $0x8] sm:$0xf]
      %v920 = vld [vmem:[%s916 + $0xc] sm:$0xf]
      %s921 = scalar_lea.vmem %s5, 5
      %v922 = vld [vmem:[%s921] sm:$0x1]
      %v923 = vunpack.c.l.bf16 %v922
      %v924 = vperm.slane %v923, 0
      %v929 = vunpack.c.l.b16 %v917
      %v930 = vunpack.c.l.b16 %v918
      %v931 = vunpack.c.l.b16 %v919
      %v932 = vunpack.c.l.b16 %v920
      %v933 = vpack.c.b16 %v930, %v929
      %v934 = vpack.c.b16 %v932, %v931
      %937 = vmatpush.bf16.msra.mxu0 0
      %938 = vmatpush.bf16.msra.mxu0 0
      %939 = vmatpush.bf16.msra.mxu0 0
      %940 = vmatpush.bf16.msra.mxu0 0
      %941 = vmatpush.bf16.msra.mxu0 0
      %942 = vmatpush.bf16.msra.mxu0 0
      %943 = vmatpush.bf16.msra.mxu0 %v934
      %944 = vmatpush.bf16.msra.mxu0 %v933
      %945 = vmatmul.bf16.gmra.mxu0 %v702
      %v946 = vpop.f32.mrf.mxu0
      %v947 = vadd.f32 %v924, %v946
      %v948 = vpop.f32.mrf.mxu0
      %949 = vdwg.mxu0
      %v950 = vmul.f32 %v879, 0.25
      %v951 = vpack.c.bf16 %v950, %v950
      %v952 = vpack.c.bf16 %v913, %v913
      %v953 = vpack.c.bf16 %v947, %v947
      %v955 = vsel %vm792, %v951, 0
      %v958 = vsel %vm792, %v952, 0
      %960 = vmatpush.bf16.xpose.msra.mxu0 0
      %961 = vmatpush.bf16.xpose.msra.mxu0 0
      %962 = vmatpush.bf16.xpose.msra.mxu0 0
      %963 = vmatpush.bf16.xpose.msra.mxu0 0
      %964 = vmatpush.bf16.xpose.msra.mxu0 0
      %965 = vmatpush.bf16.xpose.msra.mxu0 0
      %966 = vmatpush.bf16.xpose.msra.mxu0 0
      %967 = vmatpush.bf16.xpose.msra.mxu0 %v958
      %968 = vmatmul.bf16.gmra.mxu0 %v955
      %v969 = vpop.f32.mrf.mxu0
      %v970 = vadd.f32 %v790, %v969
      %v971 = vpop.f32.mrf.mxu0
      %972 = vdwg.mxu0
      %v973 = vsel %vm812, %v970, -inf
      %974 = vmax.xlane.f32.xlu0 %v973
      %v975 = vpop.xlane.xlu0 %974
      %v976 = vsub.f32 %v970, %v975
      %v977 = vmul.f32 %v976, 1.442695
      %v978 = vpow.pop %v977
      %v979 = vsel %vm812, %v978, 0.0
      %980 = vadd.xlane.f32.xlu0 %v979
      %v981 = vpop.xlane.xlu0 %980
      %v982 = vrcp.pop %v981
      %v983 = vmul.f32 %v978, %v982
      %v984 = vpack.c.bf16 %v983, %v983
      %v986 = vsel %vm812, %v984, 0
      %v989 = vsel %vm828, %v953, 0
      %991 = vmatpush.bf16.msra.mxu0 0
      %992 = vmatpush.bf16.msra.mxu0 0
      %993 = vmatpush.bf16.msra.mxu0 0
      %994 = vmatpush.bf16.msra.mxu0 0
      %995 = vmatpush.bf16.msra.mxu0 0
      %996 = vmatpush.bf16.msra.mxu0 0
      %997 = vmatpush.bf16.msra.mxu0 0
      %998 = vmatpush.bf16.msra.mxu0 %v989
      %999 = vmatmul.bf16.gmra.mxu0 %v986
      %v1000 = vpop.f32.mrf.mxu0
      %v1001 = vadd.f32 0.0, %v1000
      %v1002 = vpop.f32.mrf.mxu0
      %1003 = vdwg.mxu0
      %v1004 = vpack.c.bf16 %v1001, %v1001
      %s1005 = scalar_lea.vmem %s6, 8
      %v1006 = vld [vmem:[%s1005] sm:$0xf]
      %v1007 = vld [vmem:[%s1005 + $0x4] sm:$0xf]
      %v1010 = vunpack.c.l.b16 %v1006
      %v1011 = vunpack.c.l.b16 %v1007
      %v1012 = vpack.c.b16 %v1011, %v1010
      %v1015 = vsel %vm792, %v1004, 0
      %1017 = vmatpush.bf16.msra.mxu0 0
      %1018 = vmatpush.bf16.msra.mxu0 0
      %1019 = vmatpush.bf16.msra.mxu0 0
      %1020 = vmatpush.bf16.msra.mxu0 0
      %1021 = vmatpush.bf16.msra.mxu0 0
      %1022 = vmatpush.bf16.msra.mxu0 0
      %1023 = vmatpush.bf16.msra.mxu0 0
      %1024 = vmatpush.bf16.msra.mxu0 %v1012
      %1025 = vmatmul.bf16.gmra.mxu0 %v1015
      %v1026 = vpop.f32.mrf.mxu0
      %v1027 = vadd.f32 0.0, %v1026
      %v1028 = vpop.f32.mrf.mxu0
      %1029 = vdwg.mxu0
      %v1032 = vunpack.c.l.b16 %v846
      %v1033 = vunpack.c.l.b16 %v847
      %v1034 = vpack.c.b16 %v1033, %v1032
      %v1037 = vsel %vm792, %v845, 0
      %1039 = vmatpush.bf16.msra.mxu0 0
      %1040 = vmatpush.bf16.msra.mxu0 0
      %1041 = vmatpush.bf16.msra.mxu0 0
      %1042 = vmatpush.bf16.msra.mxu0 0
      %1043 = vmatpush.bf16.msra.mxu0 0
      %1044 = vmatpush.bf16.msra.mxu0 0
      %1045 = vmatpush.bf16.msra.mxu0 0
      %1046 = vmatpush.bf16.msra.mxu0 %v1034
      %1047 = vmatmul.bf16.gmra.mxu0 %v1037
      %v1048 = vpop.f32.mrf.mxu0
      %v1049 = vadd.f32 %v1027, %v1048
      %v1050 = vpop.f32.mrf.mxu0
      %1051 = vdwg.mxu0
      %v1052 = vld [vmem:[%s7] sm:$0x1]
      %v1053 = vunpack.c.l.bf16 %v1052
      %v1054 = vperm.slane %v1053, 0
      %v1055 = vadd.f32 %v1049, %v1054
      %v1056 = vadd.f32 %v1055, %v677
      %v1057 = vld [vmem:[%s8] sm:$0x1]
      %v1058 = vld [vmem:[%s9] sm:$0x1]
      %v1059 = vsel %vm642, %v1056, 0.0
      %1060 = vadd.xlane.f32.xlu0 %v1059
      %v1061 = vpop.xlane.xlu0 %1060
      %v1062 = vmul.f32 %v1061, %v652
      %v1063 = vsub.f32 %v1056, %v1062
      %v1064 = vmul.f32 %v1063, %v1063
      %v1065 = vsel %vm642, %v1064, 0.0
      %1066 = vadd.xlane.f32.xlu0 %v1065
      %v1067 = vpop.xlane.xlu0 %1066
      %v1068 = vmul.f32 %v1067, %v652
      %v1069 = vadd.f32 %v1068, 1e-05
      %v1070 = vrsqrt.pop %v1069
      %v1071 = vmul.f32 %v1070, %v1069
      %v1072 = vmul.f32 %v1071, %v1070
      %v1073 = vmul.f32 0.5, %v1072
      %v1074 = vsub.f32 1.5, %v1073
      %v1075 = vmul.f32 %v1070, %v1074
      %vm1076 = vweird.f32 %v1069
      %vm1077 = vweird.f32 %v1070
      %vm1078 = vmor %vm1076, %vm1077
      %v1079 = vsel %vm1078, %v1070, %v1075
      %v1080 = vmul.f32 %v1063, %v1079
      %v1081 = vunpack.c.l.bf16 %v1057
      %v1082 = vperm.slane %v1081, 0
      %v1083 = vmul.f32 %v1080, %v1082
      %v1084 = vunpack.c.l.bf16 %v1058
      %v1085 = vperm.slane %v1084, 0
      %v1086 = vadd.f32 %v1083, %v1085
      %v1087 = vpack.c.bf16 %v1086, %v1086
      %v1088 = vld [vmem:[%s10] sm:$0xf]
      %v1089 = vld [vmem:[%s10 + $0x4] sm:$0xf]
      %v1090 = vld [vmem:[%s10 + $0x8] sm:$0xf]
      %v1091 = vld [vmem:[%s10 + $0xc] sm:$0xf]
      %v1092 = vld [vmem:[%s11] sm:$0x1]
      %v1093 = vunpack.c.l.bf16 %v1092
      %v1094 = vperm.slane %v1093, 0
      %v1099 = vunpack.c.l.b16 %v1088
      %v1100 = vunpack.c.l.b16 %v1089
      %v1101 = vunpack.c.l.b16 %v1090
      %v1102 = vunpack.c.l.b16 %v1091
      %v1103 = vpack.c.b16 %v1100, %v1099
      %v1104 = vpack.c.b16 %v1102, %v1101
      %v1108 = vsel %vm642, %v1087, 0
      %1110 = vmatpush.bf16.msra.mxu0 0
      %1111 = vmatpush.bf16.msra.mxu0 0
      %1112 = vmatpush.bf16.msra.mxu0 0
      %1113 = vmatpush.bf16.msra.mxu0 0
      %1114 = vmatpush.bf16.msra.mxu0 0
      %1115 = vmatpush.bf16.msra.mxu0 0
      %1116 = vmatpush.bf16.msra.mxu0 %v1104
      %1117 = vmatpush.bf16.msra.mxu0 %v1103
      %1118 = vmatmul.bf16.gmra.mxu0 %v1108
      %v1119 = vpop.f32.mrf.mxu0
      %v1120 = vadd.f32 %v1094, %v1119
      %v1121 = vpop.f32.mrf.mxu0
      %1122 = vdwg.mxu0
      %v1123 = vmul.f32 %v1120, %v1120
      %v1124 = vmul.f32 %v1120, %v1123
      %v1125 = vmul.f32 %v1124, 0.044715
      %v1126 = vadd.f32 %v1120, %v1125
      %v1127 = vmul.f32 %v1126, 0.7978846
      %v1128 = vtanh.pop %v1127
      %v1129 = vadd.f32 %v1128, 1.0
      %v1130 = vmul.f32 %v1129, 0.5
      %v1131 = vmul.f32 %v1120, %v1130
      %v1132 = vpack.c.bf16 %v1131, %v1131
      %v1133 = vld [vmem:[%s12] sm:$0xf]
      %v1134 = vld [vmem:[%s12 + $0x4] sm:$0xf]
      %v1135 = vld [vmem:[%s12 + $0x8] sm:$0xf]
      %v1136 = vld [vmem:[%s12 + $0xc] sm:$0xf]
      %v1137 = vld [vmem:[%s12 + $0x10] sm:$0xf]
      %v1138 = vld [vmem:[%s12 + $0x14] sm:$0xf]
      %v1139 = vld [vmem:[%s12 + $0x18] sm:$0xf]
      %v1140 = vld [vmem:[%s12 + $0x1c] sm:$0xf]
      %v1141 = vld [vmem:[%s13] sm:$0x1]
      %v1142 = vunpack.c.l.bf16 %v1141
      %v1143 = vperm.slane %v1142, 0
      %v1152 = vunpack.c.l.b16 %v1133
      %v1153 = vunpack.c.l.b16 %v1134
      %v1154 = vunpack.c.l.b16 %v1135
      %v1155 = vunpack.c.l.b16 %v1136
      %v1156 = vunpack.c.l.b16 %v1137
      %v1157 = vunpack.c.l.b16 %v1138
      %v1158 = vunpack.c.l.b16 %v1139
      %v1159 = vunpack.c.l.b16 %v1140
      %v1160 = vpack.c.b16 %v1153, %v1152
      %v1161 = vpack.c.b16 %v1155, %v1154
      %v1162 = vpack.c.b16 %v1157, %v1156
      %v1163 = vpack.c.b16 %v1159, %v1158
      %vm1168 = vcmask 523264
      %v1170 = vsel %vm1168, %v1132, 0
      %1172 = vmatpush.bf16.msra.mxu0 0
      %1173 = vmatpush.bf16.msra.mxu0 0
      %1174 = vmatpush.bf16.msra.mxu0 0
      %1175 = vmatpush.bf16.msra.mxu0 0
      %1176 = vmatpush.bf16.msra.mxu0 %v1163
      %1177 = vmatpush.bf16.msra.mxu0 %v1162
      %1178 = vmatpush.bf16.msra.mxu0 %v1161
      %1179 = vmatpush.bf16.msra.mxu0 %v1160
      %1180 = vmatmul.bf16.gmra.mxu0 %v1170
      %v1181 = vpop.f32.mrf.mxu0
      %v1182 = vadd.f32 %v1143, %v1181
      %v1183 = vpop.f32.mrf.mxu0
      %1184 = vdwg.mxu0
      %v1185 = vadd.f32 %v1182, %v1086
      %v1186 = vld [vmem:[%s14] sm:$0x1]
      %v1187 = vld [vmem:[%s15] sm:$0x1]
      %v1188 = vsel %vm642, %v1185, 0.0
      %1189 = vadd.xlane.f32.xlu0 %v1188
      %v1190 = vpop.xlane.xlu0 %1189
      %v1191 = vmul.f32 %v1190, %v652
      %v1192 = vsub.f32 %v1185, %v1191
      %v1193 = vmul.f32 %v1192, %v1192
      %v1194 = vsel %vm642, %v1193, 0.0
      %1195 = vadd.xlane.f32.xlu0 %v1194
      %v1196 = vpop.xlane.xlu0 %1195
      %v1197 = vmul.f32 %v1196, %v652
      %v1198 = vadd.f32 %v1197, 1e-05
      %v1199 = vrsqrt.pop %v1198
      %v1200 = vmul.f32 %v1199, %v1198
      %v1201 = vmul.f32 %v1200, %v1199
      %v1202 = vmul.f32 0.5, %v1201
      %v1203 = vsub.f32 1.5, %v1202
      %v1204 = vmul.f32 %v1199, %v1203
      %vm1205 = vweird.f32 %v1198
      %vm1206 = vweird.f32 %v1199
      %vm1207 = vmor %vm1205, %vm1206
      %v1208 = vsel %vm1207, %v1199, %v1204
      %v1209 = vmul.f32 %v1192, %v1208
      %v1210 = vunpack.c.l.bf16 %v1186
      %v1211 = vperm.slane %v1210, 0
      %v1212 = vmul.f32 %v1209, %v1211
      %v1213 = vunpack.c.l.bf16 %v1187
      %v1214 = vperm.slane %v1213, 0
      %v1215 = vadd.f32 %v1212, %v1214
      %v1216 = vpack.c.bf16 %v1215, %v1215
      %s1217 = scalar_lea.vmem %s4, 96
      %v1218 = vld [vmem:[%s1217] sm:$0xf]
      %v1219 = vld [vmem:[%s1217 + $0x4] sm:$0xf]
      %v1220 = vld [vmem:[%s1217 + $0x8] sm:$0xf]
      %v1221 = vld [vmem:[%s1217 + $0xc] sm:$0xf]
      %s1222 = scalar_lea.vmem %s5, 6
      %v1223 = vld [vmem:[%s1222] sm:$0x1]
      %v1224 = vunpack.c.l.bf16 %v1223
      %v1225 = vperm.slane %v1224, 0
      %v1230 = vunpack.c.l.b16 %v1218
      %v1231 = vunpack.c.l.b16 %v1219
      %v1232 = vunpack.c.l.b16 %v1220
      %v1233 = vunpack.c.l.b16 %v1221
      %v1234 = vpack.c.b16 %v1231, %v1230
      %v1235 = vpack.c.b16 %v1233, %v1232
      %v1239 = vsel %vm642, %v1216, 0
      %1241 = vmatpush.bf16.msra.mxu0 0
      %1242 = vmatpush.bf16.msra.mxu0 0
      %1243 = vmatpush.bf16.msra.mxu0 0
      %1244 = vmatpush.bf16.msra.mxu0 0
      %1245 = vmatpush.bf16.msra.mxu0 0
      %1246 = vmatpush.bf16.msra.mxu0 0
      %1247 = vmatpush.bf16.msra.mxu0 %v1235
      %1248 = vmatpush.bf16.msra.mxu0 %v1234
      %1249 = vmatmul.bf16.gmra.mxu0 %v1239
      %v1250 = vpop.f32.mrf.mxu0
      %v1251 = vadd.f32 %v1225, %v1250
      %v1252 = vpop.f32.mrf.mxu0
      %1253 = vdwg.mxu0
      %s1254 = scalar_lea.vmem %s4, 128
      %v1255 = vld [vmem:[%s1254] sm:$0xf]
      %v1256 = vld [vmem:[%s1254 + $0x4] sm:$0xf]
      %v1257 = vld [vmem:[%s1254 + $0x8] sm:$0xf]
      %v1258 = vld [vmem:[%s1254 + $0xc] sm:$0xf]
      %s1259 = scalar_lea.vmem %s5, 8
      %v1260 = vld [vmem:[%s1259] sm:$0x1]
      %v1261 = vunpack.c.l.bf16 %v1260
      %v1262 = vperm.slane %v1261, 0
      %v1267 = vunpack.c.l.b16 %v1255
      %v1268 = vunpack.c.l.b16 %v1256
      %v1269 = vunpack.c.l.b16 %v1257
      %v1270 = vunpack.c.l.b16 %v1258
      %v1271 = vpack.c.b16 %v1268, %v1267
      %v1272 = vpack.c.b16 %v1270, %v1269
      %1275 = vmatpush.bf16.msra.mxu0 0
      %1276 = vmatpush.bf16.msra.mxu0 0
      %1277 = vmatpush.bf16.msra.mxu0 0
      %1278 = vmatpush.bf16.msra.mxu0 0
      %1279 = vmatpush.bf16.msra.mxu0 0
      %1280 = vmatpush.bf16.msra.mxu0 0
      %1281 = vmatpush.bf16.msra.mxu0 %v1272
      %1282 = vmatpush.bf16.msra.mxu0 %v1271
      %1283 = vmatmul.bf16.gmra.mxu0 %v1239
      %v1284 = vpop.f32.mrf.mxu0
      %v1285 = vadd.f32 %v1262, %v1284
      %v1286 = vpop.f32.mrf.mxu0
      %1287 = vdwg.mxu0
      %s1288 = scalar_lea.vmem %s4, 160
      %v1289 = vld [vmem:[%s1288] sm:$0xf]
      %v1290 = vld [vmem:[%s1288 + $0x4] sm:$0xf]
      %v1291 = vld [vmem:[%s1288 + $0x8] sm:$0xf]
      %v1292 = vld [vmem:[%s1288 + $0xc] sm:$0xf]
      %s1293 = scalar_lea.vmem %s5, 10
      %v1294 = vld [vmem:[%s1293] sm:$0x1]
      %v1295 = vunpack.c.l.bf16 %v1294
      %v1296 = vperm.slane %v1295, 0
      %v1301 = vunpack.c.l.b16 %v1289
      %v1302 = vunpack.c.l.b16 %v1290
      %v1303 = vunpack.c.l.b16 %v1291
      %v1304 = vunpack.c.l.b16 %v1292
      %v1305 = vpack.c.b16 %v1302, %v1301
      %v1306 = vpack.c.b16 %v1304, %v1303
      %1309 = vmatpush.bf16.msra.mxu0 0
      %1310 = vmatpush.bf16.msra.mxu0 0
      %1311 = vmatpush.bf16.msra.mxu0 0
      %1312 = vmatpush.bf16.msra.mxu0 0
      %1313 = vmatpush.bf16.msra.mxu0 0
      %1314 = vmatpush.bf16.msra.mxu0 0
      %1315 = vmatpush.bf16.msra.mxu0 %v1306
      %1316 = vmatpush.bf16.msra.mxu0 %v1305
      %1317 = vmatmul.bf16.gmra.mxu0 %v1239
      %v1318 = vpop.f32.mrf.mxu0
      %v1319 = vadd.f32 %v1296, %v1318
      %v1320 = vpop.f32.mrf.mxu0
      %1321 = vdwg.mxu0
      %v1322 = vmul.f32 %v1251, 0.25
      %v1323 = vpack.c.bf16 %v1322, %v1322
      %v1324 = vpack.c.bf16 %v1285, %v1285
      %v1325 = vpack.c.bf16 %v1319, %v1319
      %v1327 = vsel %vm792, %v1323, 0
      %v1330 = vsel %vm792, %v1324, 0
      %1332 = vmatpush.bf16.xpose.msra.mxu0 0
      %1333 = vmatpush.bf16.xpose.msra.mxu0 0
      %1334 = vmatpush.bf16.xpose.msra.mxu0 0
      %1335 = vmatpush.bf16.xpose.msra.mxu0 0
      %1336 = vmatpush.bf16.xpose.msra.mxu0 0
      %1337 = vmatpush.bf16.xpose.msra.mxu0 0
      %1338 = vmatpush.bf16.xpose.msra.mxu0 0
      %1339 = vmatpush.bf16.xpose.msra.mxu0 %v1330
      %1340 = vmatmul.bf16.gmra.mxu0 %v1327
      %v1341 = vpop.f32.mrf.mxu0
      %v1342 = vadd.f32 %v790, %v1341
      %v1343 = vpop.f32.mrf.mxu0
      %1344 = vdwg.mxu0
      %v1345 = vsel %vm812, %v1342, -inf
      %1346 = vmax.xlane.f32.xlu0 %v1345
      %v1347 = vpop.xlane.xlu0 %1346
      %v1348 = vsub.f32 %v1342, %v1347
      %v1349 = vmul.f32 %v1348, 1.442695
      %v1350 = vpow.pop %v1349
      %v1351 = vsel %vm812, %v1350, 0.0
      %1352 = vadd.xlane.f32.xlu0 %v1351
      %v1353 = vpop.xlane.xlu0 %1352
      %v1354 = vrcp.pop %v1353
      %v1355 = vmul.f32 %v1350, %v1354
      %v1356 = vpack.c.bf16 %v1355, %v1355
      %v1358 = vsel %vm812, %v1356, 0
      %v1361 = vsel %vm828, %v1325, 0
      %1363 = vmatpush.bf16.msra.mxu0 0
      %1364 = vmatpush.bf16.msra.mxu0 0
      %1365 = vmatpush.bf16.msra.mxu0 0
      %1366 = vmatpush.bf16.msra.mxu0 0
      %1367 = vmatpush.bf16.msra.mxu0 0
      %1368 = vmatpush.bf16.msra.mxu0 0
      %1369 = vmatpush.bf16.msra.mxu0 0
      %1370 = vmatpush.bf16.msra.mxu0 %v1361
      %1371 = vmatmul.bf16.gmra.mxu0 %v1358
      %v1372 = vpop.f32.mrf.mxu0
      %v1373 = vadd.f32 0.0, %v1372
      %v1374 = vpop.f32.mrf.mxu0
      %1375 = vdwg.mxu0
      %v1376 = vpack.c.bf16 %v1373, %v1373
      %s1377 = scalar_lea.vmem %s6, 16
      %v1378 = vld [vmem:[%s1377] sm:$0xf]
      %v1379 = vld [vmem:[%s1377 + $0x4] sm:$0xf]
      %s1380 = scalar_lea.vmem %s4, 112
      %v1381 = vld [vmem:[%s1380] sm:$0xf]
      %v1382 = vld [vmem:[%s1380 + $0x4] sm:$0xf]
      %v1383 = vld [vmem:[%s1380 + $0x8] sm:$0xf]
      %v1384 = vld [vmem:[%s1380 + $0xc] sm:$0xf]
      %s1385 = scalar_lea.vmem %s5, 7
      %v1386 = vld [vmem:[%s1385] sm:$0x1]
      %v1387 = vunpack.c.l.bf16 %v1386
      %v1388 = vperm.slane %v1387, 0
      %v1393 = vunpack.c.l.b16 %v1381
      %v1394 = vunpack.c.l.b16 %v1382
      %v1395 = vunpack.c.l.b16 %v1383
      %v1396 = vunpack.c.l.b16 %v1384
      %v1397 = vpack.c.b16 %v1394, %v1393
      %v1398 = vpack.c.b16 %v1396, %v1395
      %1401 = vmatpush.bf16.msra.mxu0 0
      %1402 = vmatpush.bf16.msra.mxu0 0
      %1403 = vmatpush.bf16.msra.mxu0 0
      %1404 = vmatpush.bf16.msra.mxu0 0
      %1405 = vmatpush.bf16.msra.mxu0 0
      %1406 = vmatpush.bf16.msra.mxu0 0
      %1407 = vmatpush.bf16.msra.mxu0 %v1398
      %1408 = vmatpush.bf16.msra.mxu0 %v1397
      %1409 = vmatmul.bf16.gmra.mxu0 %v1239
      %v1410 = vpop.f32.mrf.mxu0
      %v1411 = vadd.f32 %v1388, %v1410
      %v1412 = vpop.f32.mrf.mxu0
      %1413 = vdwg.mxu0
      %s1414 = scalar_lea.vmem %s4, 144
      %v1415 = vld [vmem:[%s1414] sm:$0xf]
      %v1416 = vld [vmem:[%s1414 + $0x4] sm:$0xf]
      %v1417 = vld [vmem:[%s1414 + $0x8] sm:$0xf]
      %v1418 = vld [vmem:[%s1414 + $0xc] sm:$0xf]
      %s1419 = scalar_lea.vmem %s5, 9
      %v1420 = vld [vmem:[%s1419] sm:$0x1]
      %v1421 = vunpack.c.l.bf16 %v1420
      %v1422 = vperm.slane %v1421, 0
      %v1427 = vunpack.c.l.b16 %v1415
      %v1428 = vunpack.c.l.b16 %v1416
      %v1429 = vunpack.c.l.b16 %v1417
      %v1430 = vunpack.c.l.b16 %v1418
      %v1431 = vpack.c.b16 %v1428, %v1427
      %v1432 = vpack.c.b16 %v1430, %v1429
      %1435 = vmatpush.bf16.msra.mxu0 0
      %1436 = vmatpush.bf16.msra.mxu0 0
      %1437 = vmatpush.bf16.msra.mxu0 0
      %1438 = vmatpush.bf16.msra.mxu0 0
      %1439 = vmatpush.bf16.msra.mxu0 0
      %1440 = vmatpush.bf16.msra.mxu0 0
      %1441 = vmatpush.bf16.msra.mxu0 %v1432
      %1442 = vmatpush.bf16.msra.mxu0 %v1431
      %1443 = vmatmul.bf16.gmra.mxu0 %v1239
      %v1444 = vpop.f32.mrf.mxu0
      %v1445 = vadd.f32 %v1422, %v1444
      %v1446 = vpop.f32.mrf.mxu0
      %1447 = vdwg.mxu0
      %s1448 = scalar_lea.vmem %s4, 176
      %v1449 = vld [vmem:[%s1448] sm:$0xf]
      %v1450 = vld [vmem:[%s1448 + $0x4] sm:$0xf]
      %v1451 = vld [vmem:[%s1448 + $0x8] sm:$0xf]
      %v1452 = vld [vmem:[%s1448 + $0xc] sm:$0xf]
      %s1453 = scalar_lea.vmem %s5, 11
      %v1454 = vld [vmem:[%s1453] sm:$0x1]
      %v1455 = vunpack.c.l.bf16 %v1454
      %v1456 = vperm.slane %v1455, 0
      %v1461 = vunpack.c.l.b16 %v1449
      %v1462 = vunpack.c.l.b16 %v1450
      %v1463 = vunpack.c.l.b16 %v1451
      %v1464 = vunpack.c.l.b16 %v1452
      %v1465 = vpack.c.b16 %v1462, %v1461
      %v1466 = vpack.c.b16 %v1464, %v1463
      %1469 = vmatpush.bf16.msra.mxu0 0
      %1470 = vmatpush.bf16.msra.mxu0 0
      %1471 = vmatpush.bf16.msra.mxu0 0
      %1472 = vmatpush.bf16.msra.mxu0 0
      %1473 = vmatpush.bf16.msra.mxu0 0
      %1474 = vmatpush.bf16.msra.mxu0 0
      %1475 = vmatpush.bf16.msra.mxu0 %v1466
      %1476 = vmatpush.bf16.msra.mxu0 %v1465
      %1477 = vmatmul.bf16.gmra.mxu0 %v1239
      %v1478 = vpop.f32.mrf.mxu0
      %v1479 = vadd.f32 %v1456, %v1478
      %v1480 = vpop.f32.mrf.mxu0
      %1481 = vdwg.mxu0
      %v1482 = vmul.f32 %v1411, 0.25
      %v1483 = vpack.c.bf16 %v1482, %v1482
      %v1484 = vpack.c.bf16 %v1445, %v1445
      %v1485 = vpack.c.bf16 %v1479, %v1479
      %v1487 = vsel %vm792, %v1483, 0
      %v1490 = vsel %vm792, %v1484, 0
      %1492 = vmatpush.bf16.xpose.msra.mxu0 0
      %1493 = vmatpush.bf16.xpose.msra.mxu0 0
      %1494 = vmatpush.bf16.xpose.msra.mxu0 0
      %1495 = vmatpush.bf16.xpose.msra.mxu0 0
      %1496 = vmatpush.bf16.xpose.msra.mxu0 0
      %1497 = vmatpush.bf16.xpose.msra.mxu0 0
      %1498 = vmatpush.bf16.xpose.msra.mxu0 0
      %1499 = vmatpush.bf16.xpose.msra.mxu0 %v1490
      %1500 = vmatmul.bf16.gmra.mxu0 %v1487
      %v1501 = vpop.f32.mrf.mxu0
      %v1502 = vadd.f32 %v790, %v1501
      %v1503 = vpop.f32.mrf.mxu0
      %1504 = vdwg.mxu0
      %v1505 = vsel %vm812, %v1502, -inf
      %1506 = vmax.xlane.f32.xlu0 %v1505
      %v1507 = vpop.xlane.xlu0 %1506
      %v1508 = vsub.f32 %v1502, %v1507
      %v1509 = vmul.f32 %v1508, 1.442695
      %v1510 = vpow.pop %v1509
      %v1511 = vsel %vm812, %v1510, 0.0
      %1512 = vadd.xlane.f32.xlu0 %v1511
      %v1513 = vpop.xlane.xlu0 %1512
      %v1514 = vrcp.pop %v1513
      %v1515 = vmul.f32 %v1510, %v1514
      %v1516 = vpack.c.bf16 %v1515, %v1515
      %v1518 = vsel %vm812, %v1516, 0
      %v1521 = vsel %vm828, %v1485, 0
      %1523 = vmatpush.bf16.msra.mxu0 0
      %1524 = vmatpush.bf16.msra.mxu0 0
      %1525 = vmatpush.bf16.msra.mxu0 0
      %1526 = vmatpush.bf16.msra.mxu0 0
      %1527 = vmatpush.bf16.msra.mxu0 0
      %1528 = vmatpush.bf16.msra.mxu0 0
      %1529 = vmatpush.bf16.msra.mxu0 0
      %1530 = vmatpush.bf16.msra.mxu0 %v1521
      %1531 = vmatmul.bf16.gmra.mxu0 %v1518
      %v1532 = vpop.f32.mrf.mxu0
      %v1533 = vadd.f32 0.0, %v1532
      %v1534 = vpop.f32.mrf.mxu0
      %1535 = vdwg.mxu0
      %v1536 = vpack.c.bf16 %v1533, %v1533
      %s1537 = scalar_lea.vmem %s6, 24
      %v1538 = vld [vmem:[%s1537] sm:$0xf]
      %v1539 = vld [vmem:[%s1537 + $0x4] sm:$0xf]
      %v1542 = vunpack.c.l.b16 %v1538
      %v1543 = vunpack.c.l.b16 %v1539
      %v1544 = vpack.c.b16 %v1543, %v1542
      %v1547 = vsel %vm792, %v1536, 0
      %1549 = vmatpush.bf16.msra.mxu0 0
      %1550 = vmatpush.bf16.msra.mxu0 0
      %1551 = vmatpush.bf16.msra.mxu0 0
      %1552 = vmatpush.bf16.msra.mxu0 0
      %1553 = vmatpush.bf16.msra.mxu0 0
      %1554 = vmatpush.bf16.msra.mxu0 0
      %1555 = vmatpush.bf16.msra.mxu0 0
      %1556 = vmatpush.bf16.msra.mxu0 %v1544
      %1557 = vmatmul.bf16.gmra.mxu0 %v1547
      %v1558 = vpop.f32.mrf.mxu0
      %v1559 = vadd.f32 0.0, %v1558
      %v1560 = vpop.f32.mrf.mxu0
      %1561 = vdwg.mxu0
      %v1564 = vunpack.c.l.b16 %v1378
      %v1565 = vunpack.c.l.b16 %v1379
      %v1566 = vpack.c.b16 %v1565, %v1564
      %v1569 = vsel %vm792, %v1376, 0
      %1571 = vmatpush.bf16.msra.mxu0 0
      %1572 = vmatpush.bf16.msra.mxu0 0
      %1573 = vmatpush.bf16.msra.mxu0 0
      %1574 = vmatpush.bf16.msra.mxu0 0
      %1575 = vmatpush.bf16.msra.mxu0 0
      %1576 = vmatpush.bf16.msra.mxu0 0
      %1577 = vmatpush.bf16.msra.mxu0 0
      %1578 = vmatpush.bf16.msra.mxu0 %v1566
      %1579 = vmatmul.bf16.gmra.mxu0 %v1569
      %v1580 = vpop.f32.mrf.mxu0
      %v1581 = vadd.f32 %v1559, %v1580
      %v1582 = vpop.f32.mrf.mxu0
      %1583 = vdwg.mxu0
      %s1584 = scalar_lea.vmem %s7, 1
      %v1585 = vld [vmem:[%s1584] sm:$0x1]
      %v1586 = vunpack.c.l.bf16 %v1585
      %v1587 = vperm.slane %v1586, 0
      %v1588 = vadd.f32 %v1581, %v1587
      %v1589 = vadd.f32 %v1588, %v1215
      %s1590 = scalar_lea.vmem %s8, 1
      %v1591 = vld [vmem:[%s1590] sm:$0x1]
      %s1592 = scalar_lea.vmem %s9, 1
      %v1593 = vld [vmem:[%s1592] sm:$0x1]
      %v1594 = vsel %vm642, %v1589, 0.0
      %1595 = vadd.xlane.f32.xlu0 %v1594
      %v1596 = vpop.xlane.xlu0 %1595
      %v1597 = vmul.f32 %v1596, %v652
      %v1598 = vsub.f32 %v1589, %v1597
      %v1599 = vmul.f32 %v1598, %v1598
      %v1600 = vsel %vm642, %v1599, 0.0
      %1601 = vadd.xlane.f32.xlu0 %v1600
      %v1602 = vpop.xlane.xlu0 %1601
      %v1603 = vmul.f32 %v1602, %v652
      %v1604 = vadd.f32 %v1603, 1e-05
      %v1605 = vrsqrt.pop %v1604
      %v1606 = vmul.f32 %v1605, %v1604
      %v1607 = vmul.f32 %v1606, %v1605
      %v1608 = vmul.f32 0.5, %v1607
      %v1609 = vsub.f32 1.5, %v1608
      %v1610 = vmul.f32 %v1605, %v1609
      %vm1611 = vweird.f32 %v1604
      %vm1612 = vweird.f32 %v1605
      %vm1613 = vmor %vm1611, %vm1612
      %v1614 = vsel %vm1613, %v1605, %v1610
      %v1615 = vmul.f32 %v1598, %v1614
      %v1616 = vunpack.c.l.bf16 %v1591
      %v1617 = vperm.slane %v1616, 0
      %v1618 = vmul.f32 %v1615, %v1617
      %v1619 = vunpack.c.l.bf16 %v1593
      %v1620 = vperm.slane %v1619, 0
      %v1621 = vadd.f32 %v1618, %v1620
      %v1622 = vpack.c.bf16 %v1621, %v1621
      %s1623 = scalar_lea.vmem %s10, 16
      %v1624 = vld [vmem:[%s1623] sm:$0xf]
      %v1625 = vld [vmem:[%s1623 + $0x4] sm:$0xf]
      %v1626 = vld [vmem:[%s1623 + $0x8] sm:$0xf]
      %v1627 = vld [vmem:[%s1623 + $0xc] sm:$0xf]
      %s1628 = scalar_lea.vmem %s11, 1
      %v1629 = vld [vmem:[%s1628] sm:$0x1]
      %v1630 = vunpack.c.l.bf16 %v1629
      %v1631 = vperm.slane %v1630, 0
      %v1636 = vunpack.c.l.b16 %v1624
      %v1637 = vunpack.c.l.b16 %v1625
      %v1638 = vunpack.c.l.b16 %v1626
      %v1639 = vunpack.c.l.b16 %v1627
      %v1640 = vpack.c.b16 %v1637, %v1636
      %v1641 = vpack.c.b16 %v1639, %v1638
      %v1645 = vsel %vm642, %v1622, 0
      %1647 = vmatpush.bf16.msra.mxu0 0
      %1648 = vmatpush.bf16.msra.mxu0 0
      %1649 = vmatpush.bf16.msra.mxu0 0
      %1650 = vmatpush.bf16.msra.mxu0 0
      %1651 = vmatpush.bf16.msra.mxu0 0
      %1652 = vmatpush.bf16.msra.mxu0 0
      %1653 = vmatpush.bf16.msra.mxu0 %v1641
      %1654 = vmatpush.bf16.msra.mxu0 %v1640
      %1655 = vmatmul.bf16.gmra.mxu0 %v1645
      %v1656 = vpop.f32.mrf.mxu0
      %v1657 = vadd.f32 %v1631, %v1656
      %v1658 = vpop.f32.mrf.mxu0
      %1659 = vdwg.mxu0
      %v1660 = vmul.f32 %v1657, %v1657
      %v1661 = vmul.f32 %v1657, %v1660
      %v1662 = vmul.f32 %v1661, 0.044715
      %v1663 = vadd.f32 %v1657, %v1662
      %v1664 = vmul.f32 %v1663, 0.7978846
      %v1665 = vtanh.pop %v1664
      %v1666 = vadd.f32 %v1665, 1.0
      %v1667 = vmul.f32 %v1666, 0.5
      %v1668 = vmul.f32 %v1657, %v1667
      %v1669 = vpack.c.bf16 %v1668, %v1668
      %s1670 = scalar_lea.vmem %s12, 32
      %v1671 = vld [vmem:[%s1670] sm:$0xf]
      %v1672 = vld [vmem:[%s1670 + $0x4] sm:$0xf]
      %v1673 = vld [vmem:[%s1670 + $0x8] sm:$0xf]
      %v1674 = vld [vmem:[%s1670 + $0xc] sm:$0xf]
      %v1675 = vld [vmem:[%s1670 + $0x10] sm:$0xf]
      %v1676 = vld [vmem:[%s1670 + $0x14] sm:$0xf]
      %v1677 = vld [vmem:[%s1670 + $0x18] sm:$0xf]
      %v1678 = vld [vmem:[%s1670 + $0x1c] sm:$0xf]
      %s1679 = scalar_lea.vmem %s13, 1
      %v1680 = vld [vmem:[%s1679] sm:$0x1]
      %v1681 = vunpack.c.l.bf16 %v1680
      %v1682 = vperm.slane %v1681, 0
      %v1691 = vunpack.c.l.b16 %v1671
      %v1692 = vunpack.c.l.b16 %v1672
      %v1693 = vunpack.c.l.b16 %v1673
      %v1694 = vunpack.c.l.b16 %v1674
      %v1695 = vunpack.c.l.b16 %v1675
      %v1696 = vunpack.c.l.b16 %v1676
      %v1697 = vunpack.c.l.b16 %v1677
      %v1698 = vunpack.c.l.b16 %v1678
      %v1699 = vpack.c.b16 %v1692, %v1691
      %v1700 = vpack.c.b16 %v1694, %v1693
      %v1701 = vpack.c.b16 %v1696, %v1695
      %v1702 = vpack.c.b16 %v1698, %v1697
      %v1708 = vsel %vm1168, %v1669, 0
      %1710 = vmatpush.bf16.msra.mxu0 0
      %1711 = vmatpush.bf16.msra.mxu0 0
      %1712 = vmatpush.bf16.msra.mxu0 0
      %1713 = vmatpush.bf16.msra.mxu0 0
      %1714 = vmatpush.bf16.msra.mxu0 %v1702
      %1715 = vmatpush.bf16.msra.mxu0 %v1701
      %1716 = vmatpush.bf16.msra.mxu0 %v1700
      %1717 = vmatpush.bf16.msra.mxu0 %v1699
      %1718 = vmatmul.bf16.gmra.mxu0 %v1708
      %v1719 = vpop.f32.mrf.mxu0
      %v1720 = vadd.f32 %v1682, %v1719
      %v1721 = vpop.f32.mrf.mxu0
      %1722 = vdwg.mxu0
      %v1723 = vadd.f32 %v1720, %v1621
      %s1724 = scalar_lea.vmem %s14, 1
      %v1725 = vld [vmem:[%s1724] sm:$0x1]
      %s1726 = scalar_lea.vmem %s15, 1
      %v1727 = vld [vmem:[%s1726] sm:$0x1]
      %v1728 = vsel %vm642, %v1723, 0.0
      %1729 = vadd.xlane.f32.xlu0 %v1728
      %v1730 = vpop.xlane.xlu0 %1729
      %v1731 = vmul.f32 %v1730, %v652
      %v1732 = vsub.f32 %v1723, %v1731
      %v1733 = vmul.f32 %v1732, %v1732
      %v1734 = vsel %vm642, %v1733, 0.0
      %1735 = vadd.xlane.f32.xlu0 %v1734
      %v1736 = vpop.xlane.xlu0 %1735
      %v1737 = vmul.f32 %v1736, %v652
      %v1738 = vadd.f32 %v1737, 1e-05
      %v1739 = vrsqrt.pop %v1738
      %v1740 = vmul.f32 %v1739, %v1738
      %v1741 = vmul.f32 %v1740, %v1739
      %v1742 = vmul.f32 0.5, %v1741
      %v1743 = vsub.f32 1.5, %v1742
      %v1744 = vmul.f32 %v1739, %v1743
      %vm1745 = vweird.f32 %v1738
      %vm1746 = vweird.f32 %v1739
      %vm1747 = vmor %vm1745, %vm1746
      %v1748 = vsel %vm1747, %v1739, %v1744
      %v1749 = vmul.f32 %v1732, %v1748
      %v1750 = vunpack.c.l.bf16 %v1725
      %v1751 = vperm.slane %v1750, 0
      %v1752 = vmul.f32 %v1749, %v1751
      %v1753 = vunpack.c.l.bf16 %v1727
      %v1754 = vperm.slane %v1753, 0
      %v1755 = vadd.f32 %v1752, %v1754
      %v1756 = vpack.c.bf16 %v1755, %v1755
      %v1757 = vld [vmem:[%s16] sm:$0xf]
      %v1758 = vld [vmem:[%s16 + $0x4] sm:$0xf]
      %v1759 = vld [vmem:[%s16 + $0x8] sm:$0xf]
      %v1760 = vld [vmem:[%s16 + $0xc] sm:$0xf]
      %v1761 = vld [vmem:[%s17] sm:$0x1]
      %v1762 = vunpack.c.l.bf16 %v1761
      %v1767 = vunpack.c.l.b16 %v1757
      %v1768 = vunpack.c.l.b16 %v1758
      %v1769 = vunpack.c.l.b16 %v1759
      %v1770 = vunpack.c.l.b16 %v1760
      %v1771 = vpack.c.b16 %v1768, %v1767
      %v1772 = vpack.c.b16 %v1770, %v1769
      %v1776 = vsel %vm642, %v1756, 0
      %1778 = vmatpush.bf16.msra.mxu0 0
      %1779 = vmatpush.bf16.msra.mxu0 0
      %1780 = vmatpush.bf16.msra.mxu0 0
      %1781 = vmatpush.bf16.msra.mxu0 0
      %1782 = vmatpush.bf16.msra.mxu0 0
      %1783 = vmatpush.bf16.msra.mxu0 0
      %1784 = vmatpush.bf16.msra.mxu0 %v1772
      %1785 = vmatpush.bf16.msra.mxu0 %v1771
      %1786 = vmatmul.bf16.gmra.mxu0 %v1776
      %v1787 = vpop.f32.mrf.mxu0
      %v1788 = vadd.f32 %v1762, %v1787
      %v1789 = vpop.f32.mrf.mxu0
      %1790 = vdwg.mxu0
      %v1791 = vtanh.pop %v1788
      %v1792 = vpack.c.bf16 %v1791, %v1791
      %v1793 = vld [vmem:[%s18] sm:$0xf]
      %v1794 = vld [vmem:[%s18 + $0x4] sm:$0xf]
      %v1795 = vld [vmem:[%s18 + $0x8] sm:$0xf]
      %v1796 = vld [vmem:[%s18 + $0xc] sm:$0xf]
      %v1797 = vld [vmem:[%s19] sm:$0x1]
      %v1798 = vunpack.c.l.bf16 %v1797
      %v1803 = vunpack.c.l.b16 %v1793
      %v1804 = vunpack.c.l.b16 %v1794
      %v1805 = vunpack.c.l.b16 %v1795
      %v1806 = vunpack.c.l.b16 %v1796
      %v1807 = vpack.c.b16 %v1804, %v1803
      %v1808 = vpack.c.b16 %v1806, %v1805
      %v1812 = vsel %vm642, %v1792, 0
      %1814 = vmatpush.bf16.msra.mxu0 0
      %1815 = vmatpush.bf16.msra.mxu0 0
      %1816 = vmatpush.bf16.msra.mxu0 0
      %1817 = vmatpush.bf16.msra.mxu0 0
      %1818 = vmatpush.bf16.msra.mxu0 0
      %1819 = vmatpush.bf16.msra.mxu0 0
      %1820 = vmatpush.bf16.msra.mxu0 %v1808
      %1821 = vmatpush.bf16.msra.mxu0 %v1807
      %1822 = vmatmul.bf16.gmra.mxu0 %v1812
      %v1823 = vpop.f32.mrf.mxu0
      %v1824 = vadd.f32 %v1798, %v1823
      %v1825 = vpop.f32.mrf.mxu0
      %1826 = vdwg.mxu0
      %v1827 = vpack.c.bf16 %v1824, %v1824
      %vm1828 = vcmask 1040384
      %vm1829 = vsmask.f32 256
      %vm1830 = vmand %vm1828, %vm1829
      %v1831 = vld [vmem:[%s636] sm:$0x1]
      %v1832 = vsel %vm1830, %v1827, %v1831
      %1833 = vst [vmem:[%s636] sm:$0x1] %v1832
      %p1834 = scmp.lt.s32.totalorder %s31, 1
      %s1835 = scalar_select %p1834, %s31, 1
      %s1836 = scalar_lea.vmem %s20, %s1835
      // Predicated region
      $region101: #{_lambda_.1} parent=99 // pred_check
        %p1837 = pneg %p479
      $region102: #{_lambda_.1} parent=99 // pred_check_branch
        %1839 = sbr.rel (%p1837) target = $region104
      $region103: #{_lambda_.1} parent=99 // pred_region
        _
      $region104: #{_lambda_.1} parent=99 // pred_fallthru
        _
    $region100: #{_lambda_.1} parent=5 // pred_fallthru
      _
    %p1840 = scmp.le.s32.totalorder 2, %s26
    // Predicated region
    $region105: #{_lambda_.1} parent=5 // pred_check
      %p1841 = pneg %p1840
    $region106: #{_lambda_.1} parent=5 // pred_check_branch
      %1843 = sbr.rel (%p1841) target = $region108
    $region107: #{_lambda_.1} parent=5 // pred_region
      %s1844 = ssub.s32 %s26, 2
      // Predicated region
      $region109: #{_lambda_.1} parent=107 // pred_check
        %p1845 = pneg %p485
      $region110: #{_lambda_.1} parent=107 // pred_check_branch
        %1847 = sbr.rel (%p1845) target = $region112
      $region111: #{_lambda_.1} parent=107 // pred_region
        %p1848 = scmp.lt.s32.totalorder %s32, 1
        %s1849 = scalar_select %p1848, %s32, 1
        %s1850 = scalar_lea.vmem %s20, %s1849
      $region112: #{_lambda_.1} parent=107 // pred_fallthru
        _
    $region108: #{_lambda_.1} parent=5 // pred_fallthru
      _
  $region6: #{_lambda_.1} parent=0 // loop_footer
    %s30 = sadd.s32 1, %s26
  $region7: #{_lambda_.1} parent=0 // loop_footer_branch
    %25 = sbr.rel target = $region3
  $region8: #{_lambda_.1} parent=0 // loop_exit
    _

</llo_original>
